<compile_context>
chip_gen: v5e
topology: v5e:2x2
jax: 0.10.0
libtpu: 0.0.40
codegen_flags: <defaults>
</compile_context>

<pallas_src>
import jax
import jax.numpy as jnp
from jax import lax
from jax.experimental import pallas as pl
from jax.experimental.pallas import tpu as pltpu

_ROW_CHUNK = 8  # 8 sublane-rows x 128 lanes = 1024 pixels per in-register chunk


# ----------------------------- Pallas kernel ------------------------------ #
def _attention_gate_kernel(g_ref, x_ref, wg_ref, wx_ref, wp_ref, bh_ref,
                           bp_ref, o_ref):
    """One (batch, pixel-tile) block; every channel is a dense (rows,128) plane.

      g_ref : (Cg, TR, 128)  gating-path pixel planes        (VMEM block)
      x_ref : (Cx, TR, 128)  skip-path pixel planes          (VMEM block)
      wg_ref: (Ci, Cg)  folded conv+BN weights, gating path  (SMEM, resident)
      wx_ref: (Ci, Cx)  folded conv+BN weights, skip path    (SMEM, resident)
      wp_ref: (Ci,)     folded psi-head weights              (SMEM, resident)
      bh_ref: (Ci,)     combined bias  bg + bx               (SMEM, resident)
      bp_ref: (1,)      psi-head bias                        (SMEM, resident)
      o_ref : (Cx, TR, 128)
    """
    cg, tr, _ = g_ref.shape
    cx = x_ref.shape[0]
    ci = bh_ref.shape[0]
    n_chunks = tr // _ROW_CHUNK

    # Hoist every scalar weight read out of the pixel-chunk loop (loop-invariant
    # SMEM scalar loads; they become splats against dense planes below).
    wg = [[wg_ref[o, c] for c in range(cg)] for o in range(ci)]
    wx = [[wx_ref[o, c] for c in range(cx)] for o in range(ci)]
    wp = [wp_ref[o] for o in range(ci)]
    bh = [bh_ref[o] for o in range(ci)]
    bp = bp_ref[0]

    def chunk(i, carry):
        r0 = pl.multiple_of(i * _ROW_CHUNK, _ROW_CHUNK)
        rows = pl.ds(r0, _ROW_CHUNK)

        # Dense (8,128) planes -> 1 vreg each; whole chunk working set ~15 vregs.
        gs = [g_ref[c, rows, :].astype(jnp.float32) for c in range(cg)]
        xs = [x_ref[c, rows, :].astype(jnp.float32) for c in range(cx)]

        # logit[p] = bp + sum_o wp[o] * relu(bh[o] + sum_c wg[o,c]*g_c[p]
        #                                           + sum_c wx[o,c]*x_c[p])
        # K = 4/8 -> unrolled VPU scalar-splat MACs; MXU would be <1% utilized.
        logit = jnp.full((_ROW_CHUNK, 128), bp, jnp.float32)
        for o in range(ci):
            h = gs[0] * wg[o][0] + bh[o]
            for c in range(1, cg):
                h = h + gs[c] * wg[o][c]
            for c in range(cx):
                h = h + xs[c] * wx[o][c]
            h = jnp.maximum(h, 0.0)                     # ReLU
            logit = logit + h * wp[o]
        psi = jax.nn.sigmoid(logit)                     # (8, 128) gate

        for c in range(cx):                             # gate broadcast over Cx
            o_ref[c, rows, :] = (xs[c] * psi).astype(o_ref.dtype)
        return carry

    # TODO(synk): on v7x, if VALU is the saturating slot, move the K=8
    # contraction onto the idle MXU via jnp.dot over an assembled (Cg+Cx, chunk)
    # tile; on HBM-bound v5e/v6e this VALU work is free filler.
    unroll = 2 if n_chunks % 2 == 0 else 1
    lax.fori_loop(0, n_chunks, chunk, 0, unroll=unroll)


# ------------------------------ helpers ------------------------------------ #
def _fold_conv_bn(w, b, gamma, beta, mean, var, eps=1e-5):
    """Fold eval-mode BatchNorm into a 1x1 conv: y = s*(Wx+b-mean)+beta."""
    s = gamma / jnp.sqrt(var + eps)             # (Cout,)
    return w * s[:, None], (b - mean) * s + beta


def _round_up(a, b):
    return (a + b - 1) // b * b


@jax.jit
def attention_gate(g, x, params):
    """g, x: NCHW float32 tensors. Returns NCHW output, matching PyTorch."""
    n, cg, hh, ww = g.shape
    _, cx, _, _ = x.shape

    wg, bg = _fold_conv_bn(params["wg"], params["bg_conv"], params["g_gamma"],
                           params["g_beta"], params["g_mean"], params["g_var"])
    wx, bx = _fold_conv_bn(params["wx"], params["bx_conv"], params["x_gamma"],
                           params["x_beta"], params["x_mean"], params["x_var"])
    wp, bp = _fold_conv_bn(params["wpsi"], params["bpsi_conv"], params["p_gamma"],
                           params["p_beta"], params["p_mean"], params["p_var"])
    ci = wg.shape[0]

    # Spatial pixels -> dense (rows, 128) lane planes (channels stay leading, so
    # this is a pure reshape of contiguous memory, no transpose).
    hw = hh * ww
    r = _round_up(pl.cdiv(hw, 128), 8)          # 128-lane rows, sublane aligned

    # Pixel-tile rows: cap at 128 rows (16K px, 256 KiB/stream at f32) and aim
    # for >= ~4-8 grid steps per batch item so the pipeline overlaps DMA with
    # compute and both v7x TensorCores get sharded work; floor of 32 rows keeps
    # DMAs large.  True double-buffered VMEM footprint (g + x + out blocks,
    # 8-sublane padded, x2 buffers) is ~1.5 MiB at Cg=Cx=4 -- far below the
    # scoped limits of v5e/v6e (16/32 MiB) and v7x (32 MiB).
    tr = min(r, 128)
    if r > 32:
        tr = min(tr, max(32, _round_up(pl.cdiv(r, 8), 8)))
    r_p = _round_up(r, tr)
    hw_p = r_p * 128

    def to_planes(a, c):
        a = a.reshape(n, c, hw)
        if hw_p != hw:
            # Ragged spatial tail only (zero pixels -> zero outputs, sliced off);
            # typical power-of-two U-Net feature maps hit this rarely.
            a = jnp.pad(a, ((0, 0), (0, 0), (0, hw_p - hw)))
        return a.reshape(n, c, r_p, 128)

    g4 = to_planes(g, cg)
    x4 = to_planes(x, cx)

    grid = (n, r_p // tr)                       # both axes independent

    out4 = pl.pallas_call(
        _attention_gate_kernel,
        out_shape=jax.ShapeDtypeStruct((n, cx, r_p, 128), x.dtype),
        grid_spec=pltpu.PrefetchScalarGridSpec(
            num_scalar_prefetch=0,
            grid=grid,
            in_specs=[
                pl.BlockSpec((None, cg, tr, 128), lambda b, i: (b, 0, i, 0)),
                pl.BlockSpec((None, cx, tr, 128), lambda b, i: (b, 0, i, 0)),
                pl.BlockSpec(memory_space=pltpu.MemorySpace.SMEM),  # Wg (Ci,Cg)
                pl.BlockSpec(memory_space=pltpu.MemorySpace.SMEM),  # Wx (Ci,Cx)
                pl.BlockSpec(memory_space=pltpu.MemorySpace.SMEM),  # Wpsi (Ci,)
                pl.BlockSpec(memory_space=pltpu.MemorySpace.SMEM),  # bg+bx (Ci,)
                pl.BlockSpec(memory_space=pltpu.MemorySpace.SMEM),  # bpsi (1,)
            ],
            out_specs=pl.BlockSpec((None, cx, tr, 128), lambda b, i: (b, 0, i, 0)),
        ),
        compiler_params=pltpu.CompilerParams(
            dimension_semantics=("parallel", "parallel"),
        ),
    )(g4, x4, wg, wx, wp.reshape(ci), bg + bx, bp)

    out3 = out4.reshape(n, cx, hw_p)
    if hw_p != hw:
        out3 = out3[..., :hw]
    return out3.reshape(n, cx, hh, ww)


# ------------------------- plain-JAX reference ----------------------------- #
def attention_gate_ref(g, x, params):
    wg, bg = _fold_conv_bn(params["wg"], params["bg_conv"], params["g_gamma"],
                           params["g_beta"], params["g_mean"], params["g_var"])
    wx, bx = _fold_conv_bn(params["wx"], params["bx_conv"], params["x_gamma"],
                           params["x_beta"], params["x_mean"], params["x_var"])
    wp, bp = _fold_conv_bn(params["wpsi"], params["bpsi_conv"], params["p_gamma"],
                           params["p_beta"], params["p_mean"], params["p_var"])
    g1 = jnp.einsum("nchw,oc->nohw", g, wg) + bg[None, :, None, None]
    x1 = jnp.einsum("nchw,oc->nohw", x, wx) + bx[None, :, None, None]
    h = jnp.maximum(g1 + x1, 0.0)
    psi = jax.nn.sigmoid(jnp.einsum("nchw,oc->nohw", h, wp) + bp[None, :, None, None])
    return x * psi


# -------------------------------- main ------------------------------------- #
if __name__ == "__main__":
    # Small shapes: batch=2, dim_g=4, dim_x=4, dim_int=8, spatial=16x16.
    N, DIM_G, DIM_X, DIM_INT, H, W = 2, 4, 4, 8, 16, 16

    key = jax.random.PRNGKey(0)
    keys = jax.random.split(key, 16)

    g = jax.random.normal(keys[0], (N, DIM_G, H, W), jnp.float32)
    x = jax.random.normal(keys[1], (N, DIM_X, H, W), jnp.float32)

    # Deterministic synthetic parameters (eval-mode BatchNorm statistics).
    params = dict(
        wg=jax.random.normal(keys[2], (DIM_INT, DIM_G), jnp.float32) * 0.2,
        bg_conv=jax.random.normal(keys[3], (DIM_INT,), jnp.float32) * 0.1,
        g_gamma=1.0 + 0.1 * jax.random.normal(keys[4], (DIM_INT,), jnp.float32),
        g_beta=0.1 * jax.random.normal(keys[5], (DIM_INT,), jnp.float32),
        g_mean=0.05 * jax.random.normal(keys[6], (DIM_INT,), jnp.float32),
        g_var=jnp.abs(jax.random.normal(keys[7], (DIM_INT,), jnp.float32)) * 0.2 + 0.8,
        wx=jax.random.normal(keys[8], (DIM_INT, DIM_X), jnp.float32) * 0.2,
        bx_conv=jax.random.normal(keys[9], (DIM_INT,), jnp.float32) * 0.1,
        x_gamma=1.0 + 0.1 * jax.random.normal(keys[10], (DIM_INT,), jnp.float32),
        x_beta=0.1 * jax.random.normal(keys[11], (DIM_INT,), jnp.float32),
        x_mean=0.05 * jax.random.normal(keys[12], (DIM_INT,), jnp.float32),
        x_var=jnp.abs(jax.random.normal(keys[13], (DIM_INT,), jnp.float32)) * 0.2 + 0.8,
        wpsi=jax.random.normal(keys[14], (1, DIM_INT), jnp.float32) * 0.2,
        bpsi_conv=jnp.zeros((1,), jnp.float32),
        p_gamma=jnp.ones((1,), jnp.float32),
        p_beta=jnp.zeros((1,), jnp.float32),
        p_mean=jnp.zeros((1,), jnp.float32),
        p_var=jnp.ones((1,), jnp.float32),
    )

    out = attention_gate(g, x, params)
    out = jax.block_until_ready(out)

    ref = attention_gate_ref(g, x, params)
    assert out.shape == (N, DIM_X, H, W)
    assert jnp.allclose(out, ref, atol=1e-5, rtol=1e-5), "mismatch vs reference"

    print("KERNEL_OK")
</pallas_src>

<mosaic_0001>
module attributes {stable_mosaic.version = 11 : i64} {
  func.func @_attention_gate_kernel(%arg0: i32, %arg1: i32, %arg2: memref<1x4x8x128xf32, #tpu.memory_space<vmem>>, %arg3: memref<1x4x8x128xf32, #tpu.memory_space<vmem>>, %arg4: memref<8x4xf32, #tpu.memory_space<smem>>, %arg5: memref<8x4xf32, #tpu.memory_space<smem>>, %arg6: memref<8xf32, #tpu.memory_space<smem>>, %arg7: memref<8xf32, #tpu.memory_space<smem>>, %arg8: memref<1xf32, #tpu.memory_space<smem>>, %arg9: memref<1x4x8x128xf32, #tpu.memory_space<vmem>>) attributes {dimension_semantics = [#tpu.dimension_semantics<parallel>, #tpu.dimension_semantics<parallel>], iteration_bounds = array<i64: 2, 1>, scalar_prefetch = 0 : i64, scratch_operands = 0 : i64, tpu.core_type = #tpu.core_type<tc>, window_params = [{transform_indices = @transform_0, window_bounds = array<i64: 1, 4, 8, 128>}, {transform_indices = @transform_1, window_bounds = array<i64: 1, 4, 8, 128>}, {transform_indices = @transform_2, window_bounds = array<i64: 8, 4>}, {transform_indices = @transform_3, window_bounds = array<i64: 8, 4>}, {transform_indices = @transform_4, window_bounds = array<i64: 8>}, {transform_indices = @transform_5, window_bounds = array<i64: 8>}, {transform_indices = @transform_6, window_bounds = array<i64: 1>}, {transform_indices = @transform_7, window_bounds = array<i64: 1, 4, 8, 128>}]} {
    %c0 = arith.constant 0 : index
    %c0_0 = arith.constant 0 : index
    %0 = memref.load %arg4[%c0, %c0_0] : memref<8x4xf32, #tpu.memory_space<smem>>
    %c0_1 = arith.constant 0 : index
    %c1 = arith.constant 1 : index
    %1 = memref.load %arg4[%c0_1, %c1] : memref<8x4xf32, #tpu.memory_space<smem>>
    %c0_2 = arith.constant 0 : index
    %c2 = arith.constant 2 : index
    %2 = memref.load %arg4[%c0_2, %c2] : memref<8x4xf32, #tpu.memory_space<smem>>
    %c0_3 = arith.constant 0 : index
    %c3 = arith.constant 3 : index
    %3 = memref.load %arg4[%c0_3, %c3] : memref<8x4xf32, #tpu.memory_space<smem>>
    %c1_4 = arith.constant 1 : index
    %c0_5 = arith.constant 0 : index
    %4 = memref.load %arg4[%c1_4, %c0_5] : memref<8x4xf32, #tpu.memory_space<smem>>
    %c1_6 = arith.constant 1 : index
    %c1_7 = arith.constant 1 : index
    %5 = memref.load %arg4[%c1_6, %c1_7] : memref<8x4xf32, #tpu.memory_space<smem>>
    %c1_8 = arith.constant 1 : index
    %c2_9 = arith.constant 2 : index
    %6 = memref.load %arg4[%c1_8, %c2_9] : memref<8x4xf32, #tpu.memory_space<smem>>
    %c1_10 = arith.constant 1 : index
    %c3_11 = arith.constant 3 : index
    %7 = memref.load %arg4[%c1_10, %c3_11] : memref<8x4xf32, #tpu.memory_space<smem>>
    %c2_12 = arith.constant 2 : index
    %c0_13 = arith.constant 0 : index
    %8 = memref.load %arg4[%c2_12, %c0_13] : memref<8x4xf32, #tpu.memory_space<smem>>
    %c2_14 = arith.constant 2 : index
    %c1_15 = arith.constant 1 : index
    %9 = memref.load %arg4[%c2_14, %c1_15] : memref<8x4xf32, #tpu.memory_space<smem>>
    %c2_16 = arith.constant 2 : index
    %c2_17 = arith.constant 2 : index
    %10 = memref.load %arg4[%c2_16, %c2_17] : memref<8x4xf32, #tpu.memory_space<smem>>
    %c2_18 = arith.constant 2 : index
    %c3_19 = arith.constant 3 : index
    %11 = memref.load %arg4[%c2_18, %c3_19] : memref<8x4xf32, #tpu.memory_space<smem>>
    %c3_20 = arith.constant 3 : index
    %c0_21 = arith.constant 0 : index
    %12 = memref.load %arg4[%c3_20, %c0_21] : memref<8x4xf32, #tpu.memory_space<smem>>
    %c3_22 = arith.constant 3 : index
    %c1_23 = arith.constant 1 : index
    %13 = memref.load %arg4[%c3_22, %c1_23] : memref<8x4xf32, #tpu.memory_space<smem>>
    %c3_24 = arith.constant 3 : index
    %c2_25 = arith.constant 2 : index
    %14 = memref.load %arg4[%c3_24, %c2_25] : memref<8x4xf32, #tpu.memory_space<smem>>
    %c3_26 = arith.constant 3 : index
    %c3_27 = arith.constant 3 : index
    %15 = memref.load %arg4[%c3_26, %c3_27] : memref<8x4xf32, #tpu.memory_space<smem>>
    %c4 = arith.constant 4 : index
    %c0_28 = arith.constant 0 : index
    %16 = memref.load %arg4[%c4, %c0_28] : memref<8x4xf32, #tpu.memory_space<smem>>
    %c4_29 = arith.constant 4 : index
    %c1_30 = arith.constant 1 : index
    %17 = memref.load %arg4[%c4_29, %c1_30] : memref<8x4xf32, #tpu.memory_space<smem>>
    %c4_31 = arith.constant 4 : index
    %c2_32 = arith.constant 2 : index
    %18 = memref.load %arg4[%c4_31, %c2_32] : memref<8x4xf32, #tpu.memory_space<smem>>
    %c4_33 = arith.constant 4 : index
    %c3_34 = arith.constant 3 : index
    %19 = memref.load %arg4[%c4_33, %c3_34] : memref<8x4xf32, #tpu.memory_space<smem>>
    %c5 = arith.constant 5 : index
    %c0_35 = arith.constant 0 : index
    %20 = memref.load %arg4[%c5, %c0_35] : memref<8x4xf32, #tpu.memory_space<smem>>
    %c5_36 = arith.constant 5 : index
    %c1_37 = arith.constant 1 : index
    %21 = memref.load %arg4[%c5_36, %c1_37] : memref<8x4xf32, #tpu.memory_space<smem>>
    %c5_38 = arith.constant 5 : index
    %c2_39 = arith.constant 2 : index
    %22 = memref.load %arg4[%c5_38, %c2_39] : memref<8x4xf32, #tpu.memory_space<smem>>
    %c5_40 = arith.constant 5 : index
    %c3_41 = arith.constant 3 : index
    %23 = memref.load %arg4[%c5_40, %c3_41] : memref<8x4xf32, #tpu.memory_space<smem>>
    %c6 = arith.constant 6 : index
    %c0_42 = arith.constant 0 : index
    %24 = memref.load %arg4[%c6, %c0_42] : memref<8x4xf32, #tpu.memory_space<smem>>
    %c6_43 = arith.constant 6 : index
    %c1_44 = arith.constant 1 : index
    %25 = memref.load %arg4[%c6_43, %c1_44] : memref<8x4xf32, #tpu.memory_space<smem>>
    %c6_45 = arith.constant 6 : index
    %c2_46 = arith.constant 2 : index
    %26 = memref.load %arg4[%c6_45, %c2_46] : memref<8x4xf32, #tpu.memory_space<smem>>
    %c6_47 = arith.constant 6 : index
    %c3_48 = arith.constant 3 : index
    %27 = memref.load %arg4[%c6_47, %c3_48] : memref<8x4xf32, #tpu.memory_space<smem>>
    %c7 = arith.constant 7 : index
    %c0_49 = arith.constant 0 : index
    %28 = memref.load %arg4[%c7, %c0_49] : memref<8x4xf32, #tpu.memory_space<smem>>
    %c7_50 = arith.constant 7 : index
    %c1_51 = arith.constant 1 : index
    %29 = memref.load %arg4[%c7_50, %c1_51] : memref<8x4xf32, #tpu.memory_space<smem>>
    %c7_52 = arith.constant 7 : index
    %c2_53 = arith.constant 2 : index
    %30 = memref.load %arg4[%c7_52, %c2_53] : memref<8x4xf32, #tpu.memory_space<smem>>
    %c7_54 = arith.constant 7 : index
    %c3_55 = arith.constant 3 : index
    %31 = memref.load %arg4[%c7_54, %c3_55] : memref<8x4xf32, #tpu.memory_space<smem>>
    %c0_56 = arith.constant 0 : index
    %c0_57 = arith.constant 0 : index
    %32 = memref.load %arg5[%c0_56, %c0_57] : memref<8x4xf32, #tpu.memory_space<smem>>
    %c0_58 = arith.constant 0 : index
    %c1_59 = arith.constant 1 : index
    %33 = memref.load %arg5[%c0_58, %c1_59] : memref<8x4xf32, #tpu.memory_space<smem>>
    %c0_60 = arith.constant 0 : index
    %c2_61 = arith.constant 2 : index
    %34 = memref.load %arg5[%c0_60, %c2_61] : memref<8x4xf32, #tpu.memory_space<smem>>
    %c0_62 = arith.constant 0 : index
    %c3_63 = arith.constant 3 : index
    %35 = memref.load %arg5[%c0_62, %c3_63] : memref<8x4xf32, #tpu.memory_space<smem>>
    %c1_64 = arith.constant 1 : index
    %c0_65 = arith.constant 0 : index
    %36 = memref.load %arg5[%c1_64, %c0_65] : memref<8x4xf32, #tpu.memory_space<smem>>
    %c1_66 = arith.constant 1 : index
    %c1_67 = arith.constant 1 : index
    %37 = memref.load %arg5[%c1_66, %c1_67] : memref<8x4xf32, #tpu.memory_space<smem>>
    %c1_68 = arith.constant 1 : index
    %c2_69 = arith.constant 2 : index
    %38 = memref.load %arg5[%c1_68, %c2_69] : memref<8x4xf32, #tpu.memory_space<smem>>
    %c1_70 = arith.constant 1 : index
    %c3_71 = arith.constant 3 : index
    %39 = memref.load %arg5[%c1_70, %c3_71] : memref<8x4xf32, #tpu.memory_space<smem>>
    %c2_72 = arith.constant 2 : index
    %c0_73 = arith.constant 0 : index
    %40 = memref.load %arg5[%c2_72, %c0_73] : memref<8x4xf32, #tpu.memory_space<smem>>
    %c2_74 = arith.constant 2 : index
    %c1_75 = arith.constant 1 : index
    %41 = memref.load %arg5[%c2_74, %c1_75] : memref<8x4xf32, #tpu.memory_space<smem>>
    %c2_76 = arith.constant 2 : index
    %c2_77 = arith.constant 2 : index
    %42 = memref.load %arg5[%c2_76, %c2_77] : memref<8x4xf32, #tpu.memory_space<smem>>
    %c2_78 = arith.constant 2 : index
    %c3_79 = arith.constant 3 : index
    %43 = memref.load %arg5[%c2_78, %c3_79] : memref<8x4xf32, #tpu.memory_space<smem>>
    %c3_80 = arith.constant 3 : index
    %c0_81 = arith.constant 0 : index
    %44 = memref.load %arg5[%c3_80, %c0_81] : memref<8x4xf32, #tpu.memory_space<smem>>
    %c3_82 = arith.constant 3 : index
    %c1_83 = arith.constant 1 : index
    %45 = memref.load %arg5[%c3_82, %c1_83] : memref<8x4xf32, #tpu.memory_space<smem>>
    %c3_84 = arith.constant 3 : index
    %c2_85 = arith.constant 2 : index
    %46 = memref.load %arg5[%c3_84, %c2_85] : memref<8x4xf32, #tpu.memory_space<smem>>
    %c3_86 = arith.constant 3 : index
    %c3_87 = arith.constant 3 : index
    %47 = memref.load %arg5[%c3_86, %c3_87] : memref<8x4xf32, #tpu.memory_space<smem>>
    %c4_88 = arith.constant 4 : index
    %c0_89 = arith.constant 0 : index
    %48 = memref.load %arg5[%c4_88, %c0_89] : memref<8x4xf32, #tpu.memory_space<smem>>
    %c4_90 = arith.constant 4 : index
    %c1_91 = arith.constant 1 : index
    %49 = memref.load %arg5[%c4_90, %c1_91] : memref<8x4xf32, #tpu.memory_space<smem>>
    %c4_92 = arith.constant 4 : index
    %c2_93 = arith.constant 2 : index
    %50 = memref.load %arg5[%c4_92, %c2_93] : memref<8x4xf32, #tpu.memory_space<smem>>
    %c4_94 = arith.constant 4 : index
    %c3_95 = arith.constant 3 : index
    %51 = memref.load %arg5[%c4_94, %c3_95] : memref<8x4xf32, #tpu.memory_space<smem>>
    %c5_96 = arith.constant 5 : index
    %c0_97 = arith.constant 0 : index
    %52 = memref.load %arg5[%c5_96, %c0_97] : memref<8x4xf32, #tpu.memory_space<smem>>
    %c5_98 = arith.constant 5 : index
    %c1_99 = arith.constant 1 : index
    %53 = memref.load %arg5[%c5_98, %c1_99] : memref<8x4xf32, #tpu.memory_space<smem>>
    %c5_100 = arith.constant 5 : index
    %c2_101 = arith.constant 2 : index
    %54 = memref.load %arg5[%c5_100, %c2_101] : memref<8x4xf32, #tpu.memory_space<smem>>
    %c5_102 = arith.constant 5 : index
    %c3_103 = arith.constant 3 : index
    %55 = memref.load %arg5[%c5_102, %c3_103] : memref<8x4xf32, #tpu.memory_space<smem>>
    %c6_104 = arith.constant 6 : index
    %c0_105 = arith.constant 0 : index
    %56 = memref.load %arg5[%c6_104, %c0_105] : memref<8x4xf32, #tpu.memory_space<smem>>
    %c6_106 = arith.constant 6 : index
    %c1_107 = arith.constant 1 : index
    %57 = memref.load %arg5[%c6_106, %c1_107] : memref<8x4xf32, #tpu.memory_space<smem>>
    %c6_108 = arith.constant 6 : index
    %c2_109 = arith.constant 2 : index
    %58 = memref.load %arg5[%c6_108, %c2_109] : memref<8x4xf32, #tpu.memory_space<smem>>
    %c6_110 = arith.constant 6 : index
    %c3_111 = arith.constant 3 : index
    %59 = memref.load %arg5[%c6_110, %c3_111] : memref<8x4xf32, #tpu.memory_space<smem>>
    %c7_112 = arith.constant 7 : index
    %c0_113 = arith.constant 0 : index
    %60 = memref.load %arg5[%c7_112, %c0_113] : memref<8x4xf32, #tpu.memory_space<smem>>
    %c7_114 = arith.constant 7 : index
    %c1_115 = arith.constant 1 : index
    %61 = memref.load %arg5[%c7_114, %c1_115] : memref<8x4xf32, #tpu.memory_space<smem>>
    %c7_116 = arith.constant 7 : index
    %c2_117 = arith.constant 2 : index
    %62 = memref.load %arg5[%c7_116, %c2_117] : memref<8x4xf32, #tpu.memory_space<smem>>
    %c7_118 = arith.constant 7 : index
    %c3_119 = arith.constant 3 : index
    %63 = memref.load %arg5[%c7_118, %c3_119] : memref<8x4xf32, #tpu.memory_space<smem>>
    %c0_120 = arith.constant 0 : index
    %64 = memref.load %arg6[%c0_120] : memref<8xf32, #tpu.memory_space<smem>>
    %c1_121 = arith.constant 1 : index
    %65 = memref.load %arg6[%c1_121] : memref<8xf32, #tpu.memory_space<smem>>
    %c2_122 = arith.constant 2 : index
    %66 = memref.load %arg6[%c2_122] : memref<8xf32, #tpu.memory_space<smem>>
    %c3_123 = arith.constant 3 : index
    %67 = memref.load %arg6[%c3_123] : memref<8xf32, #tpu.memory_space<smem>>
    %c4_124 = arith.constant 4 : index
    %68 = memref.load %arg6[%c4_124] : memref<8xf32, #tpu.memory_space<smem>>
    %c5_125 = arith.constant 5 : index
    %69 = memref.load %arg6[%c5_125] : memref<8xf32, #tpu.memory_space<smem>>
    %c6_126 = arith.constant 6 : index
    %70 = memref.load %arg6[%c6_126] : memref<8xf32, #tpu.memory_space<smem>>
    %c7_127 = arith.constant 7 : index
    %71 = memref.load %arg6[%c7_127] : memref<8xf32, #tpu.memory_space<smem>>
    %c0_128 = arith.constant 0 : index
    %72 = memref.load %arg7[%c0_128] : memref<8xf32, #tpu.memory_space<smem>>
    %c1_129 = arith.constant 1 : index
    %73 = memref.load %arg7[%c1_129] : memref<8xf32, #tpu.memory_space<smem>>
    %c2_130 = arith.constant 2 : index
    %74 = memref.load %arg7[%c2_130] : memref<8xf32, #tpu.memory_space<smem>>
    %c3_131 = arith.constant 3 : index
    %75 = memref.load %arg7[%c3_131] : memref<8xf32, #tpu.memory_space<smem>>
    %c4_132 = arith.constant 4 : index
    %76 = memref.load %arg7[%c4_132] : memref<8xf32, #tpu.memory_space<smem>>
    %c5_133 = arith.constant 5 : index
    %77 = memref.load %arg7[%c5_133] : memref<8xf32, #tpu.memory_space<smem>>
    %c6_134 = arith.constant 6 : index
    %78 = memref.load %arg7[%c6_134] : memref<8xf32, #tpu.memory_space<smem>>
    %c7_135 = arith.constant 7 : index
    %79 = memref.load %arg7[%c7_135] : memref<8xf32, #tpu.memory_space<smem>>
    %c0_136 = arith.constant 0 : index
    %80 = memref.load %arg8[%c0_136] : memref<1xf32, #tpu.memory_space<smem>>
    %c0_i32 = arith.constant 0 : i32
    %c8_i32 = arith.constant 8 : i32
    %81 = arith.muli %c0_i32, %c8_i32 : i32
    %82 = tpu.assume_multiple %81, 8 : i32
    %c0_137 = arith.constant 0 : index
    %c0_138 = arith.constant 0 : index
    %83 = arith.index_cast %82 : i32 to index
    %c0_139 = arith.constant 0 : index
    %84 = vector.load %arg2[%c0_137, %c0_138, %83, %c0_139] : memref<1x4x8x128xf32, #tpu.memory_space<vmem>>, vector<1x1x8x128xf32>
    %85 = vector.shape_cast %84 : vector<1x1x8x128xf32> to vector<8x128xf32>
    %c0_140 = arith.constant 0 : index
    %c1_141 = arith.constant 1 : index
    %86 = arith.index_cast %82 : i32 to index
    %c0_142 = arith.constant 0 : index
    %87 = vector.load %arg2[%c0_140, %c1_141, %86, %c0_142] : memref<1x4x8x128xf32, #tpu.memory_space<vmem>>, vector<1x1x8x128xf32>
    %88 = vector.shape_cast %87 : vector<1x1x8x128xf32> to vector<8x128xf32>
    %c0_143 = arith.constant 0 : index
    %c2_144 = arith.constant 2 : index
    %89 = arith.index_cast %82 : i32 to index
    %c0_145 = arith.constant 0 : index
    %90 = vector.load %arg2[%c0_143, %c2_144, %89, %c0_145] : memref<1x4x8x128xf32, #tpu.memory_space<vmem>>, vector<1x1x8x128xf32>
    %91 = vector.shape_cast %90 : vector<1x1x8x128xf32> to vector<8x128xf32>
    %c0_146 = arith.constant 0 : index
    %c3_147 = arith.constant 3 : index
    %92 = arith.index_cast %82 : i32 to index
    %c0_148 = arith.constant 0 : index
    %93 = vector.load %arg2[%c0_146, %c3_147, %92, %c0_148] : memref<1x4x8x128xf32, #tpu.memory_space<vmem>>, vector<1x1x8x128xf32>
    %94 = vector.shape_cast %93 : vector<1x1x8x128xf32> to vector<8x128xf32>
    %c0_149 = arith.constant 0 : index
    %c0_150 = arith.constant 0 : index
    %95 = arith.index_cast %82 : i32 to index
    %c0_151 = arith.constant 0 : index
    %96 = vector.load %arg3[%c0_149, %c0_150, %95, %c0_151] : memref<1x4x8x128xf32, #tpu.memory_space<vmem>>, vector<1x1x8x128xf32>
    %97 = vector.shape_cast %96 : vector<1x1x8x128xf32> to vector<8x128xf32>
    %c0_152 = arith.constant 0 : index
    %c1_153 = arith.constant 1 : index
    %98 = arith.index_cast %82 : i32 to index
    %c0_154 = arith.constant 0 : index
    %99 = vector.load %arg3[%c0_152, %c1_153, %98, %c0_154] : memref<1x4x8x128xf32, #tpu.memory_space<vmem>>, vector<1x1x8x128xf32>
    %100 = vector.shape_cast %99 : vector<1x1x8x128xf32> to vector<8x128xf32>
    %c0_155 = arith.constant 0 : index
    %c2_156 = arith.constant 2 : index
    %101 = arith.index_cast %82 : i32 to index
    %c0_157 = arith.constant 0 : index
    %102 = vector.load %arg3[%c0_155, %c2_156, %101, %c0_157] : memref<1x4x8x128xf32, #tpu.memory_space<vmem>>, vector<1x1x8x128xf32>
    %103 = vector.shape_cast %102 : vector<1x1x8x128xf32> to vector<8x128xf32>
    %c0_158 = arith.constant 0 : index
    %c3_159 = arith.constant 3 : index
    %104 = arith.index_cast %82 : i32 to index
    %c0_160 = arith.constant 0 : index
    %105 = vector.load %arg3[%c0_158, %c3_159, %104, %c0_160] : memref<1x4x8x128xf32, #tpu.memory_space<vmem>>, vector<1x1x8x128xf32>
    %106 = vector.shape_cast %105 : vector<1x1x8x128xf32> to vector<8x128xf32>
    %107 = vector.broadcast %80 : f32 to vector<8x128xf32>
    %108 = vector.broadcast %0 : f32 to vector<8x128xf32>
    %109 = arith.mulf %85, %108 : vector<8x128xf32>
    %110 = vector.broadcast %72 : f32 to vector<8x128xf32>
    %111 = arith.addf %109, %110 : vector<8x128xf32>
    %112 = vector.broadcast %1 : f32 to vector<8x128xf32>
    %113 = arith.mulf %88, %112 : vector<8x128xf32>
    %114 = arith.addf %111, %113 : vector<8x128xf32>
    %115 = vector.broadcast %2 : f32 to vector<8x128xf32>
    %116 = arith.mulf %91, %115 : vector<8x128xf32>
    %117 = arith.addf %114, %116 : vector<8x128xf32>
    %118 = vector.broadcast %3 : f32 to vector<8x128xf32>
    %119 = arith.mulf %94, %118 : vector<8x128xf32>
    %120 = arith.addf %117, %119 : vector<8x128xf32>
    %121 = vector.broadcast %32 : f32 to vector<8x128xf32>
    %122 = arith.mulf %97, %121 : vector<8x128xf32>
    %123 = arith.addf %120, %122 : vector<8x128xf32>
    %124 = vector.broadcast %33 : f32 to vector<8x128xf32>
    %125 = arith.mulf %100, %124 : vector<8x128xf32>
    %126 = arith.addf %123, %125 : vector<8x128xf32>
    %127 = vector.broadcast %34 : f32 to vector<8x128xf32>
    %128 = arith.mulf %103, %127 : vector<8x128xf32>
    %129 = arith.addf %126, %128 : vector<8x128xf32>
    %130 = vector.broadcast %35 : f32 to vector<8x128xf32>
    %131 = arith.mulf %106, %130 : vector<8x128xf32>
    %132 = arith.addf %129, %131 : vector<8x128xf32>
    %cst = arith.constant 0.000000e+00 : f32
    %133 = vector.broadcast %cst : f32 to vector<8x128xf32>
    %134 = arith.maximumf %132, %133 : vector<8x128xf32>
    %135 = vector.broadcast %64 : f32 to vector<8x128xf32>
    %136 = arith.mulf %134, %135 : vector<8x128xf32>
    %137 = arith.addf %107, %136 : vector<8x128xf32>
    %138 = vector.broadcast %4 : f32 to vector<8x128xf32>
    %139 = arith.mulf %85, %138 : vector<8x128xf32>
    %140 = vector.broadcast %73 : f32 to vector<8x128xf32>
    %141 = arith.addf %139, %140 : vector<8x128xf32>
    %142 = vector.broadcast %5 : f32 to vector<8x128xf32>
    %143 = arith.mulf %88, %142 : vector<8x128xf32>
    %144 = arith.addf %141, %143 : vector<8x128xf32>
    %145 = vector.broadcast %6 : f32 to vector<8x128xf32>
    %146 = arith.mulf %91, %145 : vector<8x128xf32>
    %147 = arith.addf %144, %146 : vector<8x128xf32>
    %148 = vector.broadcast %7 : f32 to vector<8x128xf32>
    %149 = arith.mulf %94, %148 : vector<8x128xf32>
    %150 = arith.addf %147, %149 : vector<8x128xf32>
    %151 = vector.broadcast %36 : f32 to vector<8x128xf32>
    %152 = arith.mulf %97, %151 : vector<8x128xf32>
    %153 = arith.addf %150, %152 : vector<8x128xf32>
    %154 = vector.broadcast %37 : f32 to vector<8x128xf32>
    %155 = arith.mulf %100, %154 : vector<8x128xf32>
    %156 = arith.addf %153, %155 : vector<8x128xf32>
    %157 = vector.broadcast %38 : f32 to vector<8x128xf32>
    %158 = arith.mulf %103, %157 : vector<8x128xf32>
    %159 = arith.addf %156, %158 : vector<8x128xf32>
    %160 = vector.broadcast %39 : f32 to vector<8x128xf32>
    %161 = arith.mulf %106, %160 : vector<8x128xf32>
    %162 = arith.addf %159, %161 : vector<8x128xf32>
    %cst_161 = arith.constant 0.000000e+00 : f32
    %163 = vector.broadcast %cst_161 : f32 to vector<8x128xf32>
    %164 = arith.maximumf %162, %163 : vector<8x128xf32>
    %165 = vector.broadcast %65 : f32 to vector<8x128xf32>
    %166 = arith.mulf %164, %165 : vector<8x128xf32>
    %167 = arith.addf %137, %166 : vector<8x128xf32>
    %168 = vector.broadcast %8 : f32 to vector<8x128xf32>
    %169 = arith.mulf %85, %168 : vector<8x128xf32>
    %170 = vector.broadcast %74 : f32 to vector<8x128xf32>
    %171 = arith.addf %169, %170 : vector<8x128xf32>
    %172 = vector.broadcast %9 : f32 to vector<8x128xf32>
    %173 = arith.mulf %88, %172 : vector<8x128xf32>
    %174 = arith.addf %171, %173 : vector<8x128xf32>
    %175 = vector.broadcast %10 : f32 to vector<8x128xf32>
    %176 = arith.mulf %91, %175 : vector<8x128xf32>
    %177 = arith.addf %174, %176 : vector<8x128xf32>
    %178 = vector.broadcast %11 : f32 to vector<8x128xf32>
    %179 = arith.mulf %94, %178 : vector<8x128xf32>
    %180 = arith.addf %177, %179 : vector<8x128xf32>
    %181 = vector.broadcast %40 : f32 to vector<8x128xf32>
    %182 = arith.mulf %97, %181 : vector<8x128xf32>
    %183 = arith.addf %180, %182 : vector<8x128xf32>
    %184 = vector.broadcast %41 : f32 to vector<8x128xf32>
    %185 = arith.mulf %100, %184 : vector<8x128xf32>
    %186 = arith.addf %183, %185 : vector<8x128xf32>
    %187 = vector.broadcast %42 : f32 to vector<8x128xf32>
    %188 = arith.mulf %103, %187 : vector<8x128xf32>
    %189 = arith.addf %186, %188 : vector<8x128xf32>
    %190 = vector.broadcast %43 : f32 to vector<8x128xf32>
    %191 = arith.mulf %106, %190 : vector<8x128xf32>
    %192 = arith.addf %189, %191 : vector<8x128xf32>
    %cst_162 = arith.constant 0.000000e+00 : f32
    %193 = vector.broadcast %cst_162 : f32 to vector<8x128xf32>
    %194 = arith.maximumf %192, %193 : vector<8x128xf32>
    %195 = vector.broadcast %66 : f32 to vector<8x128xf32>
    %196 = arith.mulf %194, %195 : vector<8x128xf32>
    %197 = arith.addf %167, %196 : vector<8x128xf32>
    %198 = vector.broadcast %12 : f32 to vector<8x128xf32>
    %199 = arith.mulf %85, %198 : vector<8x128xf32>
    %200 = vector.broadcast %75 : f32 to vector<8x128xf32>
    %201 = arith.addf %199, %200 : vector<8x128xf32>
    %202 = vector.broadcast %13 : f32 to vector<8x128xf32>
    %203 = arith.mulf %88, %202 : vector<8x128xf32>
    %204 = arith.addf %201, %203 : vector<8x128xf32>
    %205 = vector.broadcast %14 : f32 to vector<8x128xf32>
    %206 = arith.mulf %91, %205 : vector<8x128xf32>
    %207 = arith.addf %204, %206 : vector<8x128xf32>
    %208 = vector.broadcast %15 : f32 to vector<8x128xf32>
    %209 = arith.mulf %94, %208 : vector<8x128xf32>
    %210 = arith.addf %207, %209 : vector<8x128xf32>
    %211 = vector.broadcast %44 : f32 to vector<8x128xf32>
    %212 = arith.mulf %97, %211 : vector<8x128xf32>
    %213 = arith.addf %210, %212 : vector<8x128xf32>
    %214 = vector.broadcast %45 : f32 to vector<8x128xf32>
    %215 = arith.mulf %100, %214 : vector<8x128xf32>
    %216 = arith.addf %213, %215 : vector<8x128xf32>
    %217 = vector.broadcast %46 : f32 to vector<8x128xf32>
    %218 = arith.mulf %103, %217 : vector<8x128xf32>
    %219 = arith.addf %216, %218 : vector<8x128xf32>
    %220 = vector.broadcast %47 : f32 to vector<8x128xf32>
    %221 = arith.mulf %106, %220 : vector<8x128xf32>
    %222 = arith.addf %219, %221 : vector<8x128xf32>
    %cst_163 = arith.constant 0.000000e+00 : f32
    %223 = vector.broadcast %cst_163 : f32 to vector<8x128xf32>
    %224 = arith.maximumf %222, %223 : vector<8x128xf32>
    %225 = vector.broadcast %67 : f32 to vector<8x128xf32>
    %226 = arith.mulf %224, %225 : vector<8x128xf32>
    %227 = arith.addf %197, %226 : vector<8x128xf32>
    %228 = vector.broadcast %16 : f32 to vector<8x128xf32>
    %229 = arith.mulf %85, %228 : vector<8x128xf32>
    %230 = vector.broadcast %76 : f32 to vector<8x128xf32>
    %231 = arith.addf %229, %230 : vector<8x128xf32>
    %232 = vector.broadcast %17 : f32 to vector<8x128xf32>
    %233 = arith.mulf %88, %232 : vector<8x128xf32>
    %234 = arith.addf %231, %233 : vector<8x128xf32>
    %235 = vector.broadcast %18 : f32 to vector<8x128xf32>
    %236 = arith.mulf %91, %235 : vector<8x128xf32>
    %237 = arith.addf %234, %236 : vector<8x128xf32>
    %238 = vector.broadcast %19 : f32 to vector<8x128xf32>
    %239 = arith.mulf %94, %238 : vector<8x128xf32>
    %240 = arith.addf %237, %239 : vector<8x128xf32>
    %241 = vector.broadcast %48 : f32 to vector<8x128xf32>
    %242 = arith.mulf %97, %241 : vector<8x128xf32>
    %243 = arith.addf %240, %242 : vector<8x128xf32>
    %244 = vector.broadcast %49 : f32 to vector<8x128xf32>
    %245 = arith.mulf %100, %244 : vector<8x128xf32>
    %246 = arith.addf %243, %245 : vector<8x128xf32>
    %247 = vector.broadcast %50 : f32 to vector<8x128xf32>
    %248 = arith.mulf %103, %247 : vector<8x128xf32>
    %249 = arith.addf %246, %248 : vector<8x128xf32>
    %250 = vector.broadcast %51 : f32 to vector<8x128xf32>
    %251 = arith.mulf %106, %250 : vector<8x128xf32>
    %252 = arith.addf %249, %251 : vector<8x128xf32>
    %cst_164 = arith.constant 0.000000e+00 : f32
    %253 = vector.broadcast %cst_164 : f32 to vector<8x128xf32>
    %254 = arith.maximumf %252, %253 : vector<8x128xf32>
    %255 = vector.broadcast %68 : f32 to vector<8x128xf32>
    %256 = arith.mulf %254, %255 : vector<8x128xf32>
    %257 = arith.addf %227, %256 : vector<8x128xf32>
    %258 = vector.broadcast %20 : f32 to vector<8x128xf32>
    %259 = arith.mulf %85, %258 : vector<8x128xf32>
    %260 = vector.broadcast %77 : f32 to vector<8x128xf32>
    %261 = arith.addf %259, %260 : vector<8x128xf32>
    %262 = vector.broadcast %21 : f32 to vector<8x128xf32>
    %263 = arith.mulf %88, %262 : vector<8x128xf32>
    %264 = arith.addf %261, %263 : vector<8x128xf32>
    %265 = vector.broadcast %22 : f32 to vector<8x128xf32>
    %266 = arith.mulf %91, %265 : vector<8x128xf32>
    %267 = arith.addf %264, %266 : vector<8x128xf32>
    %268 = vector.broadcast %23 : f32 to vector<8x128xf32>
    %269 = arith.mulf %94, %268 : vector<8x128xf32>
    %270 = arith.addf %267, %269 : vector<8x128xf32>
    %271 = vector.broadcast %52 : f32 to vector<8x128xf32>
    %272 = arith.mulf %97, %271 : vector<8x128xf32>
    %273 = arith.addf %270, %272 : vector<8x128xf32>
    %274 = vector.broadcast %53 : f32 to vector<8x128xf32>
    %275 = arith.mulf %100, %274 : vector<8x128xf32>
    %276 = arith.addf %273, %275 : vector<8x128xf32>
    %277 = vector.broadcast %54 : f32 to vector<8x128xf32>
    %278 = arith.mulf %103, %277 : vector<8x128xf32>
    %279 = arith.addf %276, %278 : vector<8x128xf32>
    %280 = vector.broadcast %55 : f32 to vector<8x128xf32>
    %281 = arith.mulf %106, %280 : vector<8x128xf32>
    %282 = arith.addf %279, %281 : vector<8x128xf32>
    %cst_165 = arith.constant 0.000000e+00 : f32
    %283 = vector.broadcast %cst_165 : f32 to vector<8x128xf32>
    %284 = arith.maximumf %282, %283 : vector<8x128xf32>
    %285 = vector.broadcast %69 : f32 to vector<8x128xf32>
    %286 = arith.mulf %284, %285 : vector<8x128xf32>
    %287 = arith.addf %257, %286 : vector<8x128xf32>
    %288 = vector.broadcast %24 : f32 to vector<8x128xf32>
    %289 = arith.mulf %85, %288 : vector<8x128xf32>
    %290 = vector.broadcast %78 : f32 to vector<8x128xf32>
    %291 = arith.addf %289, %290 : vector<8x128xf32>
    %292 = vector.broadcast %25 : f32 to vector<8x128xf32>
    %293 = arith.mulf %88, %292 : vector<8x128xf32>
    %294 = arith.addf %291, %293 : vector<8x128xf32>
    %295 = vector.broadcast %26 : f32 to vector<8x128xf32>
    %296 = arith.mulf %91, %295 : vector<8x128xf32>
    %297 = arith.addf %294, %296 : vector<8x128xf32>
    %298 = vector.broadcast %27 : f32 to vector<8x128xf32>
    %299 = arith.mulf %94, %298 : vector<8x128xf32>
    %300 = arith.addf %297, %299 : vector<8x128xf32>
    %301 = vector.broadcast %56 : f32 to vector<8x128xf32>
    %302 = arith.mulf %97, %301 : vector<8x128xf32>
    %303 = arith.addf %300, %302 : vector<8x128xf32>
    %304 = vector.broadcast %57 : f32 to vector<8x128xf32>
    %305 = arith.mulf %100, %304 : vector<8x128xf32>
    %306 = arith.addf %303, %305 : vector<8x128xf32>
    %307 = vector.broadcast %58 : f32 to vector<8x128xf32>
    %308 = arith.mulf %103, %307 : vector<8x128xf32>
    %309 = arith.addf %306, %308 : vector<8x128xf32>
    %310 = vector.broadcast %59 : f32 to vector<8x128xf32>
    %311 = arith.mulf %106, %310 : vector<8x128xf32>
    %312 = arith.addf %309, %311 : vector<8x128xf32>
    %cst_166 = arith.constant 0.000000e+00 : f32
    %313 = vector.broadcast %cst_166 : f32 to vector<8x128xf32>
    %314 = arith.maximumf %312, %313 : vector<8x128xf32>
    %315 = vector.broadcast %70 : f32 to vector<8x128xf32>
    %316 = arith.mulf %314, %315 : vector<8x128xf32>
    %317 = arith.addf %287, %316 : vector<8x128xf32>
    %318 = vector.broadcast %28 : f32 to vector<8x128xf32>
    %319 = arith.mulf %85, %318 : vector<8x128xf32>
    %320 = vector.broadcast %79 : f32 to vector<8x128xf32>
    %321 = arith.addf %319, %320 : vector<8x128xf32>
    %322 = vector.broadcast %29 : f32 to vector<8x128xf32>
    %323 = arith.mulf %88, %322 : vector<8x128xf32>
    %324 = arith.addf %321, %323 : vector<8x128xf32>
    %325 = vector.broadcast %30 : f32 to vector<8x128xf32>
    %326 = arith.mulf %91, %325 : vector<8x128xf32>
    %327 = arith.addf %324, %326 : vector<8x128xf32>
    %328 = vector.broadcast %31 : f32 to vector<8x128xf32>
    %329 = arith.mulf %94, %328 : vector<8x128xf32>
    %330 = arith.addf %327, %329 : vector<8x128xf32>
    %331 = vector.broadcast %60 : f32 to vector<8x128xf32>
    %332 = arith.mulf %97, %331 : vector<8x128xf32>
    %333 = arith.addf %330, %332 : vector<8x128xf32>
    %334 = vector.broadcast %61 : f32 to vector<8x128xf32>
    %335 = arith.mulf %100, %334 : vector<8x128xf32>
    %336 = arith.addf %333, %335 : vector<8x128xf32>
    %337 = vector.broadcast %62 : f32 to vector<8x128xf32>
    %338 = arith.mulf %103, %337 : vector<8x128xf32>
    %339 = arith.addf %336, %338 : vector<8x128xf32>
    %340 = vector.broadcast %63 : f32 to vector<8x128xf32>
    %341 = arith.mulf %106, %340 : vector<8x128xf32>
    %342 = arith.addf %339, %341 : vector<8x128xf32>
    %cst_167 = arith.constant 0.000000e+00 : f32
    %343 = vector.broadcast %cst_167 : f32 to vector<8x128xf32>
    %344 = arith.maximumf %342, %343 : vector<8x128xf32>
    %345 = vector.broadcast %71 : f32 to vector<8x128xf32>
    %346 = arith.mulf %344, %345 : vector<8x128xf32>
    %347 = arith.addf %317, %346 : vector<8x128xf32>
    %348 = arith.negf %347 : vector<8x128xf32>
    %349 = math.exp %348 : vector<8x128xf32>
    %cst_168 = arith.constant 1.000000e+00 : f32
    %350 = vector.broadcast %cst_168 : f32 to vector<8x128xf32>
    %351 = arith.addf %350, %349 : vector<8x128xf32>
    %352 = arith.divf %350, %351 : vector<8x128xf32>
    %353 = arith.mulf %97, %352 : vector<8x128xf32>
    %c0_169 = arith.constant 0 : index
    %c0_170 = arith.constant 0 : index
    %354 = arith.index_cast %82 : i32 to index
    %c0_171 = arith.constant 0 : index
    %355 = vector.load %arg9[%c0_169, %c0_170, %354, %c0_171] : memref<1x4x8x128xf32, #tpu.memory_space<vmem>>, vector<1x1x8x128xf32>
    %356 = vector.shape_cast %355 : vector<1x1x8x128xf32> to vector<8x128xf32>
    %357 = vector.shape_cast %353 : vector<8x128xf32> to vector<1x1x8x128xf32>
    tpu.vector_store %arg9[%c0_169, %c0_170, %354, %c0_171], %357 {strides = array<i32>} : memref<1x4x8x128xf32, #tpu.memory_space<vmem>>, vector<1x1x8x128xf32>,
    %358 = arith.mulf %100, %352 : vector<8x128xf32>
    %c0_172 = arith.constant 0 : index
    %c1_173 = arith.constant 1 : index
    %359 = arith.index_cast %82 : i32 to index
    %c0_174 = arith.constant 0 : index
    %360 = vector.load %arg9[%c0_172, %c1_173, %359, %c0_174] : memref<1x4x8x128xf32, #tpu.memory_space<vmem>>, vector<1x1x8x128xf32>
    %361 = vector.shape_cast %360 : vector<1x1x8x128xf32> to vector<8x128xf32>
    %362 = vector.shape_cast %358 : vector<8x128xf32> to vector<1x1x8x128xf32>
    tpu.vector_store %arg9[%c0_172, %c1_173, %359, %c0_174], %362 {strides = array<i32>} : memref<1x4x8x128xf32, #tpu.memory_space<vmem>>, vector<1x1x8x128xf32>,
    %363 = arith.mulf %103, %352 : vector<8x128xf32>
    %c0_175 = arith.constant 0 : index
    %c2_176 = arith.constant 2 : index
    %364 = arith.index_cast %82 : i32 to index
    %c0_177 = arith.constant 0 : index
    %365 = vector.load %arg9[%c0_175, %c2_176, %364, %c0_177] : memref<1x4x8x128xf32, #tpu.memory_space<vmem>>, vector<1x1x8x128xf32>
    %366 = vector.shape_cast %365 : vector<1x1x8x128xf32> to vector<8x128xf32>
    %367 = vector.shape_cast %363 : vector<8x128xf32> to vector<1x1x8x128xf32>
    tpu.vector_store %arg9[%c0_175, %c2_176, %364, %c0_177], %367 {strides = array<i32>} : memref<1x4x8x128xf32, #tpu.memory_space<vmem>>, vector<1x1x8x128xf32>,
    %368 = arith.mulf %106, %352 : vector<8x128xf32>
    %c0_178 = arith.constant 0 : index
    %c3_179 = arith.constant 3 : index
    %369 = arith.index_cast %82 : i32 to index
    %c0_180 = arith.constant 0 : index
    %370 = vector.load %arg9[%c0_178, %c3_179, %369, %c0_180] : memref<1x4x8x128xf32, #tpu.memory_space<vmem>>, vector<1x1x8x128xf32>
    %371 = vector.shape_cast %370 : vector<1x1x8x128xf32> to vector<8x128xf32>
    %372 = vector.shape_cast %368 : vector<8x128xf32> to vector<1x1x8x128xf32>
    tpu.vector_store %arg9[%c0_178, %c3_179, %369, %c0_180], %372 {strides = array<i32>} : memref<1x4x8x128xf32, #tpu.memory_space<vmem>>, vector<1x1x8x128xf32>,
    %c1_i32 = arith.constant 1 : i32
    return
  }
  func.func @transform_0(%arg0: i32, %arg1: i32) -> (i32, i32, i32, i32) {
    %c0_i32 = arith.constant 0 : i32
    %c0_i32_0 = arith.constant 0 : i32
    %c0_i32_1 = arith.constant 0 : i32
    return %arg0, %c0_i32, %arg1, %c0_i32_0 : i32, i32, i32, i32
  }
  func.func @transform_1(%arg0: i32, %arg1: i32) -> (i32, i32, i32, i32) {
    %c0_i32 = arith.constant 0 : i32
    %c0_i32_0 = arith.constant 0 : i32
    %c0_i32_1 = arith.constant 0 : i32
    return %arg0, %c0_i32, %arg1, %c0_i32_0 : i32, i32, i32, i32
  }
  func.func @transform_2(%arg0: i32, %arg1: i32) -> (i32, i32) {
    %c0_i32 = arith.constant 0 : i32
    %c0_i32_0 = arith.constant 0 : i32
    %c0_i32_1 = arith.constant 0 : i32
    return %c0_i32, %c0_i32_0 : i32, i32
  }
  func.func @transform_3(%arg0: i32, %arg1: i32) -> (i32, i32) {
    %c0_i32 = arith.constant 0 : i32
    %c0_i32_0 = arith.constant 0 : i32
    %c0_i32_1 = arith.constant 0 : i32
    return %c0_i32, %c0_i32_0 : i32, i32
  }
  func.func @transform_4(%arg0: i32, %arg1: i32) -> i32 {
    %c0_i32 = arith.constant 0 : i32
    %c0_i32_0 = arith.constant 0 : i32
    return %c0_i32 : i32
  }
  func.func @transform_5(%arg0: i32, %arg1: i32) -> i32 {
    %c0_i32 = arith.constant 0 : i32
    %c0_i32_0 = arith.constant 0 : i32
    return %c0_i32 : i32
  }
  func.func @transform_6(%arg0: i32, %arg1: i32) -> i32 {
    %c0_i32 = arith.constant 0 : i32
    %c0_i32_0 = arith.constant 0 : i32
    return %c0_i32 : i32
  }
  func.func @transform_7(%arg0: i32, %arg1: i32) -> (i32, i32, i32, i32) {
    %c0_i32 = arith.constant 0 : i32
    %c0_i32_0 = arith.constant 0 : i32
    %c0_i32_1 = arith.constant 0 : i32
    return %arg0, %c0_i32, %arg1, %c0_i32_0 : i32, i32, i32, i32
  }
}

</mosaic_0001>

<llo_original>
// kernel: attention_gate.1
$region0: #{attention_gate.1}
  #allocation0 [shape = 'u32[]', space=smem, size = 0x4, offset = 0x4, fixed_abs, tag = 'smem constant byte address 0x4 - core index']
  #allocation1 [shape = 'u32[72,128]{1,0:T(1,128)}', space=vmem, size = 0x9000, scoped, tag = 'internal scratch']
  #allocation2 [shape = 'f32[1]{0:T(128)S(6)}', space=smem, size = 0x200, scoped, tag = 'scoped memory for attention_gate.1']
  %s0 = inlined_call_operand.vmem [shape: f32[2,4,8,128], index: 0, kind: input, shape index: {}]
  %s1 = inlined_call_operand.vmem [shape: f32[2,4,8,128], index: 1, kind: input, shape index: {}]
  %s2 = inlined_call_operand.vmem [shape: f32[8,4], index: 2, kind: input, shape index: {}]
  %s3 = inlined_call_operand.vmem [shape: f32[8,4], index: 3, kind: input, shape index: {}]
  %s4 = inlined_call_operand.vmem [shape: f32[8], index: 4, kind: input, shape index: {}]
  %s5 = inlined_call_operand.vmem [shape: f32[8], index: 5, kind: input, shape index: {}]
  %s6 = inlined_call_operand.<no memory space> [shape: f32[1], index: 6, kind: input, shape index: {}]
  %s7 = inlined_call_operand.vmem [shape: f32[2,4,8,128], index: 7, kind: output, shape index: {}]
  %s8 = sld [smem:[#allocation0]]
  $region77: #{attention_gate.1} parent=0
    _
  %s10 = ssub.s32 1, %s8
  %s11 = scalar_select 0, %s10, %s8
  %12 = sst [smem:[#allocation2]] %s6
  $region1: #{attention_gate.1} parent=0
    #allocation3 [shape = 'u8[4096]{0}', space=smem, size = 0x1000, scoped, tag = 'input window, operand 2, single buffered']
    #allocation4 [shape = 's32[2]{0}', space=sflag, size = 0x8, scoped, tag = 'scoped memory for attention_gate.1']
    #allocation5 [shape = 'u8[4096]{0}', space=smem, size = 0x1000, scoped, tag = 'input window, operand 3, single buffered']
    #allocation6 [shape = 's32[1]{0}', space=sflag, size = 0x4, scoped, tag = 'scoped memory for attention_gate.1']
    #allocation7 [shape = 'u8[512]{0}', space=smem, size = 0x200, scoped, tag = 'input window, operand 4, single buffered']
    #allocation8 [shape = 'u8[512]{0}', space=smem, size = 0x200, scoped, tag = 'input window, operand 5, single buffered']
    #allocation9 [shape = 's32[1]{0}', space=sflag, size = 0x4, scoped, tag = 'scoped memory for attention_gate.1']
    %13 = vsyncpa [#allocation4], 0
    %14 = vsyncpa [#allocation6], 0
    %15 = vsyncpa [#allocation9], 0
    loop: start=0, step=1, limit=4
    $region2: #{attention_gate.1} parent=1 // loop_pre_header
      _
    $region3: #{attention_gate.1} parent=1 // loop_header
      %s17 = sphi 0, %s21
      %p18 = scmp.ge.s32.totalorder %s17, 4
      %s24 = sphi 0, %s36
      %s25 = sphi 0, %s32
      %s26 = sphi 0, %s24
      %s27 = sphi 0, %s25
      %s28 = sphi 0, %s26
      %s29 = sphi 0, %s27
      %s41 = sphi 0, %s43
      %s44 = sphi 0, %s41
      %s45 = sphi 0, %s44
      %s61 = sphi 0, %s45
      %s69 = sphi 0, %s71
      %s72 = sphi 0, %s69
      %s73 = sphi 0, %s72
      %s89 = sphi 0, %s73
      %s93 = sphi 0, %s93
      %s95 = sphi 0, %s93
      %s96 = sphi 0, %s95
      %s110 = sphi 0, %s96
      %s114 = sphi 0, %s114
      %s116 = sphi 0, %s114
      %s117 = sphi 0, %s116
      %s131 = sphi 0, %s117
      %s135 = sphi 0, %s135
      %s137 = sphi 0, %s135
      %s138 = sphi 0, %s137
      %s152 = sphi 0, %s138
      %s156 = sphi 0, %s156
      %s158 = sphi 0, %s156
      %s159 = sphi 0, %s158
      %s173 = sphi 0, %s159
      %s177 = sphi 0, %s177
      %s179 = sphi 0, %s177
      %s180 = sphi 0, %s179
      %s194 = sphi 0, %s180
      %s202 = sphi 0, %s204
      %s205 = sphi 0, %s202
      %s206 = sphi 0, %s205
      %s222 = sphi 0, %s206
    $region4: #{attention_gate.1} parent=1 // loop_header_branch
      %20 = sbr.rel (%p18) target = $region8
    $region5: #{attention_gate.1} parent=1 // loop_body
      %s22 = ssub.s32 %s17, 1
      %s23 = ssub.s32 %s17, 2
      %s30 = sadd.s32 1, %s25
      %p31 = scmp.ge.s32.totalorder %s30, 1
      %s32 = scalar_select %p31, 0, %s30
      %s33 = sadd.s32 1, %s24
      %s34 = scalar_select %p31, %s33, %s24
      %p35 = scmp.ge.s32.totalorder %s34, 2
      %s36 = scalar_select %p35, 0, %s34
      %s37 = ssub.s32 %s24, %s36
      %s38 = ssub.s32 %s25, %s32
      %s39 = sor.u32 %s37, %s38
      %p40 = scmp.eq.s32.totalorder %s39, 0
      %s42 = sadd.s32 %s41, 1
      %s43 = scalar_select %p40, %s41, %s42
      %p46 = pneg %p40
      %p47 = scmp.eq.s32.totalorder %s17, 1
      %p48 = por %p46, %p47
      %p49 = scmp.ne.s32.totalorder %s41, %s44
      %p50 = scmp.eq.s32.totalorder %s17, 0
      %p51 = por %p49, %p50
      %p52 = scmp.ne.s32.totalorder %s41, %s44
      %p53 = scmp.eq.s32.totalorder %s22, 1
      %p54 = por %p52, %p53
      %p55 = scmp.ne.s32.totalorder %s44, %s45
      %p56 = scmp.eq.s32.totalorder %s22, 0
      %p57 = por %p55, %p56
      %p58 = scmp.ne.s32.totalorder %s44, %s45
      %p59 = scmp.eq.s32.totalorder %s23, 1
      %p60 = por %p58, %p59
      %p62 = scmp.ne.s32.totalorder %s45, %s61
      %p63 = scmp.eq.s32.totalorder %s23, 0
      %p64 = por %p62, %p63
      %s65 = ssub.s32 %s24, %s36
      %s66 = ssub.s32 %s25, %s32
      %s67 = sor.u32 %s65, %s66
      %p68 = scmp.eq.s32.totalorder %s67, 0
      %s70 = sadd.s32 %s69, 1
      %s71 = scalar_select %p68, %s69, %s70
      %p74 = pneg %p68
      %p75 = scmp.eq.s32.totalorder %s17, 1
      %p76 = por %p74, %p75
      %p77 = scmp.ne.s32.totalorder %s69, %s72
      %p78 = scmp.eq.s32.totalorder %s17, 0
      %p79 = por %p77, %p78
      %p80 = scmp.ne.s32.totalorder %s69, %s72
      %p81 = scmp.eq.s32.totalorder %s22, 1
      %p82 = por %p80, %p81
      %p83 = scmp.ne.s32.totalorder %s72, %s73
      %p84 = scmp.eq.s32.totalorder %s22, 0
      %p85 = por %p83, %p84
      %p86 = scmp.ne.s32.totalorder %s72, %s73
      %p87 = scmp.eq.s32.totalorder %s23, 1
      %p88 = por %p86, %p87
      %p90 = scmp.ne.s32.totalorder %s73, %s89
      %p91 = scmp.eq.s32.totalorder %s23, 0
      %p92 = por %p90, %p91
      %s94 = sadd.s32 %s93, 1
      %p97 = scmp.eq.s32.totalorder %s17, 1
      %p98 = scmp.ne.s32.totalorder %s93, %s95
      %p99 = scmp.eq.s32.totalorder %s17, 0
      %p100 = por %p98, %p99
      %p101 = scmp.ne.s32.totalorder %s93, %s95
      %p102 = scmp.eq.s32.totalorder %s22, 1
      %p103 = por %p101, %p102
      %p104 = scmp.ne.s32.totalorder %s95, %s96
      %p105 = scmp.eq.s32.totalorder %s22, 0
      %p106 = por %p104, %p105
      %p107 = scmp.ne.s32.totalorder %s95, %s96
      %p108 = scmp.eq.s32.totalorder %s23, 1
      %p109 = por %p107, %p108
      %p111 = scmp.ne.s32.totalorder %s96, %s110
      %p112 = scmp.eq.s32.totalorder %s23, 0
      %p113 = por %p111, %p112
      %s115 = sadd.s32 %s114, 1
      %p118 = scmp.eq.s32.totalorder %s17, 1
      %p119 = scmp.ne.s32.totalorder %s114, %s116
      %p120 = scmp.eq.s32.totalorder %s17, 0
      %p121 = por %p119, %p120
      %p122 = scmp.ne.s32.totalorder %s114, %s116
      %p123 = scmp.eq.s32.totalorder %s22, 1
      %p124 = por %p122, %p123
      %p125 = scmp.ne.s32.totalorder %s116, %s117
      %p126 = scmp.eq.s32.totalorder %s22, 0
      %p127 = por %p125, %p126
      %p128 = scmp.ne.s32.totalorder %s116, %s117
      %p129 = scmp.eq.s32.totalorder %s23, 1
      %p130 = por %p128, %p129
      %p132 = scmp.ne.s32.totalorder %s117, %s131
      %p133 = scmp.eq.s32.totalorder %s23, 0
      %p134 = por %p132, %p133
      %s136 = sadd.s32 %s135, 1
      %p139 = scmp.eq.s32.totalorder %s17, 1
      %p140 = scmp.ne.s32.totalorder %s135, %s137
      %p141 = scmp.eq.s32.totalorder %s17, 0
      %p142 = por %p140, %p141
      %p143 = scmp.ne.s32.totalorder %s135, %s137
      %p144 = scmp.eq.s32.totalorder %s22, 1
      %p145 = por %p143, %p144
      %p146 = scmp.ne.s32.totalorder %s137, %s138
      %p147 = scmp.eq.s32.totalorder %s22, 0
      %p148 = por %p146, %p147
      %p149 = scmp.ne.s32.totalorder %s137, %s138
      %p150 = scmp.eq.s32.totalorder %s23, 1
      %p151 = por %p149, %p150
      %p153 = scmp.ne.s32.totalorder %s138, %s152
      %p154 = scmp.eq.s32.totalorder %s23, 0
      %p155 = por %p153, %p154
      %s157 = sadd.s32 %s156, 1
      %p160 = scmp.eq.s32.totalorder %s17, 1
      %p161 = scmp.ne.s32.totalorder %s156, %s158
      %p162 = scmp.eq.s32.totalorder %s17, 0
      %p163 = por %p161, %p162
      %p164 = scmp.ne.s32.totalorder %s156, %s158
      %p165 = scmp.eq.s32.totalorder %s22, 1
      %p166 = por %p164, %p165
      %p167 = scmp.ne.s32.totalorder %s158, %s159
      %p168 = scmp.eq.s32.totalorder %s22, 0
      %p169 = por %p167, %p168
      %p170 = scmp.ne.s32.totalorder %s158, %s159
      %p171 = scmp.eq.s32.totalorder %s23, 1
      %p172 = por %p170, %p171
      %p174 = scmp.ne.s32.totalorder %s159, %s173
      %p175 = scmp.eq.s32.totalorder %s23, 0
      %p176 = por %p174, %p175
      %s178 = sadd.s32 %s177, 1
      %p181 = scmp.eq.s32.totalorder %s17, 1
      %p182 = scmp.ne.s32.totalorder %s177, %s179
      %p183 = scmp.eq.s32.totalorder %s17, 0
      %p184 = por %p182, %p183
      %p185 = scmp.ne.s32.totalorder %s177, %s179
      %p186 = scmp.eq.s32.totalorder %s22, 1
      %p187 = por %p185, %p186
      %p188 = scmp.ne.s32.totalorder %s179, %s180
      %p189 = scmp.eq.s32.totalorder %s22, 0
      %p190 = por %p188, %p189
      %p191 = scmp.ne.s32.totalorder %s179, %s180
      %p192 = scmp.eq.s32.totalorder %s23, 1
      %p193 = por %p191, %p192
      %p195 = scmp.ne.s32.totalorder %s180, %s194
      %p196 = scmp.eq.s32.totalorder %s23, 0
      %p197 = por %p195, %p196
      %s198 = ssub.s32 %s24, %s36
      %s199 = ssub.s32 %s25, %s32
      %s200 = sor.u32 %s198, %s199
      %p201 = scmp.eq.s32.totalorder %s200, 0
      %s203 = sadd.s32 %s202, 1
      %s204 = scalar_select %p201, %s202, %s203
      %p207 = pneg %p201
      %p208 = scmp.eq.s32.totalorder %s17, 1
      %p209 = por %p207, %p208
      %p210 = scmp.ne.s32.totalorder %s202, %s205
      %p211 = scmp.eq.s32.totalorder %s17, 0
      %p212 = por %p210, %p211
      %p213 = scmp.ne.s32.totalorder %s202, %s205
      %p214 = scmp.eq.s32.totalorder %s22, 1
      %p215 = por %p213, %p214
      %p216 = scmp.ne.s32.totalorder %s205, %s206
      %p217 = scmp.eq.s32.totalorder %s22, 0
      %p218 = por %p216, %p217
      %p219 = scmp.ne.s32.totalorder %s205, %s206
      %p220 = scmp.eq.s32.totalorder %s23, 1
      %p221 = por %p219, %p220
      %p223 = scmp.ne.s32.totalorder %s206, %s222
      %p224 = scmp.eq.s32.totalorder %s23, 0
      %p225 = por %p223, %p224
      %p226 = scmp.le.s32.totalorder 1, %s17
      %p227 = scmp.lt.s32.totalorder %s17, 3
      %p228 = pnand %p226, %p227
      %p229 = pneg %p228
      // Predicated region
      $region9: #{attention_gate.1} parent=5 // pred_check
        _
      $region10: #{attention_gate.1} parent=5 // pred_check_branch
        %231 = sbr.rel (%p228) target = $region12
      $region11: #{attention_gate.1} parent=5 // pred_region
        %s232 = ssub.s32 %s17, 1
        // Predicated region
        $region13: #{attention_gate.1} parent=11 // pred_check
          %p233 = pneg %p106
        $region14: #{attention_gate.1} parent=11 // pred_check_branch
          %235 = sbr.rel (%p233) target = $region16
        $region15: #{attention_gate.1} parent=11 // pred_region
          %237 = vsyncadd [#allocation4], 0
          %s239 = sshll.u32 %s2, 4
          %s240 = int_to_ptr.vmem [resolvable:$true] %s239
          %242 = dma.vmem_to_smem %s240, 128, [#allocation3], [#allocation4]
        $region16: #{attention_gate.1} parent=11 // pred_fallthru
          _
        // Predicated region
        $region17: #{attention_gate.1} parent=11 // pred_check
          %p243 = pneg %p127
        $region18: #{attention_gate.1} parent=11 // pred_check_branch
          %245 = sbr.rel (%p243) target = $region20
        $region19: #{attention_gate.1} parent=11 // pred_region
          %247 = vsyncadd [#allocation6], 0
          %s249 = sshll.u32 %s3, 4
          %s250 = int_to_ptr.vmem [resolvable:$true] %s249
          %252 = dma.vmem_to_smem %s250, 128, [#allocation5], [#allocation6]
        $region20: #{attention_gate.1} parent=11 // pred_fallthru
          _
        // Predicated region
        $region21: #{attention_gate.1} parent=11 // pred_check
          %p253 = pneg %p148
        $region22: #{attention_gate.1} parent=11 // pred_check_branch
          %255 = sbr.rel (%p253) target = $region24
        $region23: #{attention_gate.1} parent=11 // pred_region
          %257 = vsyncadd [#allocation6], 0
          %s259 = sshll.u32 %s4, 4
          %s260 = int_to_ptr.vmem [resolvable:$true] %s259
          %262 = dma.vmem_to_smem %s260, 16, [#allocation7], [#allocation6]
        $region24: #{attention_gate.1} parent=11 // pred_fallthru
          _
        // Predicated region
        $region25: #{attention_gate.1} parent=11 // pred_check
          %p263 = pneg %p169
        $region26: #{attention_gate.1} parent=11 // pred_check_branch
          %265 = sbr.rel (%p263) target = $region28
        $region27: #{attention_gate.1} parent=11 // pred_region
          %267 = vsyncadd [#allocation9], 0
          %s269 = sshll.u32 %s5, 4
          %s270 = int_to_ptr.vmem [resolvable:$true] %s269
          %272 = dma.vmem_to_smem %s270, 16, [#allocation8], [#allocation9]
        $region28: #{attention_gate.1} parent=11 // pred_fallthru
          _
        // Predicated region
        $region29: #{attention_gate.1} parent=11 // pred_check
          %p273 = pneg %p190
        $region30: #{attention_gate.1} parent=11 // pred_check_branch
          %275 = sbr.rel (%p273) target = $region32
        $region31: #{attention_gate.1} parent=11 // pred_region
          _
        $region32: #{attention_gate.1} parent=11 // pred_fallthru
          _
      $region12: #{attention_gate.1} parent=5 // pred_fallthru
        _
      %p276 = scmp.lt.s32.totalorder %s17, 2
      // Predicated region
      $region33: #{attention_gate.1} parent=5 // pred_check
        %p277 = pneg %p276
      $region34: #{attention_gate.1} parent=5 // pred_check_branch
        %279 = sbr.rel (%p277) target = $region36
      $region35: #{attention_gate.1} parent=5 // pred_region
        // Predicated region
        $region37: #{attention_gate.1} parent=35 // pred_check
          %p280 = pneg %p51
        $region38: #{attention_gate.1} parent=35 // pred_check_branch
          %282 = sbr.rel (%p280) target = $region40
        $region39: #{attention_gate.1} parent=35 // pred_region
          %p283 = scmp.lt.s32.totalorder %s24, 1
          %s284 = scalar_select %p283, %s24, 1
          %p285 = scmp.lt.s32.totalorder %s25, 0
          %s286 = scalar_select %p285, %s25, 0
          %s287 = smul.addr %s284, 4
          %s288 = sadd.s32 %s286, %s287
          %s289 = smul.addr %s288, 8
          %s290 = scalar_lea.vmem %s0, %s289
        $region40: #{attention_gate.1} parent=35 // pred_fallthru
          _
        // Predicated region
        $region41: #{attention_gate.1} parent=35 // pred_check
          %p291 = pneg %p79
        $region42: #{attention_gate.1} parent=35 // pred_check_branch
          %293 = sbr.rel (%p291) target = $region44
        $region43: #{attention_gate.1} parent=35 // pred_region
          %p294 = scmp.lt.s32.totalorder %s24, 1
          %s295 = scalar_select %p294, %s24, 1
          %p296 = scmp.lt.s32.totalorder %s25, 0
          %s297 = scalar_select %p296, %s25, 0
          %s298 = smul.addr %s295, 4
          %s299 = sadd.s32 %s297, %s298
          %s300 = smul.addr %s299, 8
          %s301 = scalar_lea.vmem %s1, %s300
        $region44: #{attention_gate.1} parent=35 // pred_fallthru
          _
      $region36: #{attention_gate.1} parent=5 // pred_fallthru
        _
      %p302 = scmp.le.s32.totalorder 1, %s17
      %p303 = scmp.lt.s32.totalorder %s17, 3
      %p304 = pnand %p302, %p303
      %p305 = pneg %p304
      // Predicated region
      $region45: #{attention_gate.1} parent=5 // pred_check
        _
      $region46: #{attention_gate.1} parent=5 // pred_check_branch
        %307 = sbr.rel (%p304) target = $region48
      $region47: #{attention_gate.1} parent=5 // pred_region
        %s308 = ssub.s32 %s17, 1
        // Predicated region
        $region49: #{attention_gate.1} parent=47 // pred_check
          %p309 = pneg %p106
        $region50: #{attention_gate.1} parent=47 // pred_check_branch
          %311 = sbr.rel (%p309) target = $region52
        $region51: #{attention_gate.1} parent=47 // pred_region
          %313 = dma.done [#allocation4], 128
        $region52: #{attention_gate.1} parent=47 // pred_fallthru
          _
        // Predicated region
        $region53: #{attention_gate.1} parent=47 // pred_check
          %p314 = pneg %p127
        $region54: #{attention_gate.1} parent=47 // pred_check_branch
          %316 = sbr.rel (%p314) target = $region56
        $region55: #{attention_gate.1} parent=47 // pred_region
          %318 = dma.done [#allocation6], 128
        $region56: #{attention_gate.1} parent=47 // pred_fallthru
          _
        // Predicated region
        $region57: #{attention_gate.1} parent=47 // pred_check
          %p319 = pneg %p148
        $region58: #{attention_gate.1} parent=47 // pred_check_branch
          %321 = sbr.rel (%p319) target = $region60
        $region59: #{attention_gate.1} parent=47 // pred_region
          %323 = dma.done [#allocation6], 16
        $region60: #{attention_gate.1} parent=47 // pred_fallthru
          _
        // Predicated region
        $region61: #{attention_gate.1} parent=47 // pred_check
          %p324 = pneg %p169
        $region62: #{attention_gate.1} parent=47 // pred_check_branch
          %326 = sbr.rel (%p324) target = $region64
        $region63: #{attention_gate.1} parent=47 // pred_region
          %328 = dma.done [#allocation9], 16
        $region64: #{attention_gate.1} parent=47 // pred_fallthru
          _
        %329 = sfence
        %p330 = scmp.lt.s32.totalorder %s26, 1
        %s331 = scalar_select %p330, %s26, 1
        %p332 = scmp.lt.s32.totalorder %s27, 0
        %s333 = scalar_select %p332, %s27, 0
        %s334 = smul.addr %s331, 4
        %s335 = sadd.s32 %s333, %s334
        %s336 = smul.addr %s335, 8
        %s337 = scalar_lea.vmem %s0, %s336
        %p338 = pneg %p57
        %p339 = pneg %p54
        %p340 = scmp.lt.s32.totalorder %s26, 1
        %s341 = scalar_select %p340, %s26, 1
        %p342 = scmp.lt.s32.totalorder %s27, 0
        %s343 = scalar_select %p342, %s27, 0
        %s344 = smul.addr %s341, 4
        %s345 = sadd.s32 %s343, %s344
        %s346 = smul.addr %s345, 8
        %s347 = scalar_lea.vmem %s1, %s346
        %p348 = pneg %p85
        %p349 = pneg %p82
        %p350 = pneg %p106
        %p351 = pneg %p103
        %p352 = pneg %p127
        %p353 = pneg %p124
        %p354 = pneg %p148
        %p355 = pneg %p145
        %p356 = pneg %p169
        %p357 = pneg %p166
        %p358 = pneg %p190
        %p359 = pneg %p187
        %p360 = pneg %p218
        %p361 = pneg %p215
        %p362 = scmp.lt.s32.totalorder %s26, 1
        %s363 = scalar_select %p362, %s26, 1
        %p364 = scmp.lt.s32.totalorder %s27, 0
        %s365 = scalar_select %p364, %s27, 0
        %s366 = smul.addr %s363, 4
        %s367 = sadd.s32 %s365, %s366
        %s368 = smul.addr %s367, 8
        %s369 = scalar_lea.vmem %s7, %s368
        %p370 = scmp.lt.s32.totalorder %s26, 1
        %s371 = scalar_select %p370, %s26, 1
        %p372 = scmp.lt.s32.totalorder %s27, 0
        %s373 = scalar_select %p372, %s27, 0
        %s374 = smul.addr %s371, 4
        %s375 = sadd.s32 %s373, %s374
        %s376 = smul.addr %s375, 8
        %s377 = scalar_lea.vmem %s0, %s376
        %p378 = scmp.lt.s32.totalorder %s26, 1
        %s379 = scalar_select %p378, %s26, 1
        %p380 = scmp.lt.s32.totalorder %s27, 0
        %s381 = scalar_select %p380, %s27, 0
        %s382 = smul.addr %s379, 4
        %s383 = sadd.s32 %s381, %s382
        %s384 = smul.addr %s383, 8
        %s385 = scalar_lea.vmem %s1, %s384
        %p386 = scmp.lt.s32.totalorder %s26, 1
        %s387 = scalar_select %p386, %s26, 1
        %p388 = scmp.lt.s32.totalorder %s27, 0
        %s389 = scalar_select %p388, %s27, 0
        %s390 = smul.addr %s387, 4
        %s391 = sadd.s32 %s389, %s390
        %s392 = smul.addr %s391, 8
        %s393 = scalar_lea.vmem %s7, %s392
        %s394 = sld [smem:[#allocation3]]
        %s395 = sld [smem:[#allocation3 + $0x1]]
        %s396 = sld [smem:[#allocation3 + $0x2]]
        %s397 = sld [smem:[#allocation3 + $0x3]]
        %s398 = sld [smem:[#allocation3 + $0x80]]
        %s399 = sld [smem:[#allocation3 + $0x81]]
        %s400 = sld [smem:[#allocation3 + $0x82]]
        %s401 = sld [smem:[#allocation3 + $0x83]]
        %s402 = sld [smem:[#allocation3 + $0x100]]
        %s403 = sld [smem:[#allocation3 + $0x101]]
        %s404 = sld [smem:[#allocation3 + $0x102]]
        %s405 = sld [smem:[#allocation3 + $0x103]]
        %s406 = sld [smem:[#allocation3 + $0x180]]
        %s407 = sld [smem:[#allocation3 + $0x181]]
        %s408 = sld [smem:[#allocation3 + $0x182]]
        %s409 = sld [smem:[#allocation3 + $0x183]]
        %s410 = sld [smem:[#allocation3 + $0x200]]
        %s411 = sld [smem:[#allocation3 + $0x201]]
        %s412 = sld [smem:[#allocation3 + $0x202]]
        %s413 = sld [smem:[#allocation3 + $0x203]]
        %s414 = sld [smem:[#allocation3 + $0x280]]
        %s415 = sld [smem:[#allocation3 + $0x281]]
        %s416 = sld [smem:[#allocation3 + $0x282]]
        %s417 = sld [smem:[#allocation3 + $0x283]]
        %s418 = sld [smem:[#allocation3 + $0x300]]
        %s419 = sld [smem:[#allocation3 + $0x301]]
        %s420 = sld [smem:[#allocation3 + $0x302]]
        %s421 = sld [smem:[#allocation3 + $0x303]]
        %s422 = sld [smem:[#allocation3 + $0x380]]
        %s423 = sld [smem:[#allocation3 + $0x381]]
        %s424 = sld [smem:[#allocation3 + $0x382]]
        %s425 = sld [smem:[#allocation3 + $0x383]]
        %s426 = sld [smem:[#allocation5]]
        %s427 = sld [smem:[#allocation5 + $0x1]]
        %s428 = sld [smem:[#allocation5 + $0x2]]
        %s429 = sld [smem:[#allocation5 + $0x3]]
        %s430 = sld [smem:[#allocation5 + $0x80]]
        %s431 = sld [smem:[#allocation5 + $0x81]]
        %s432 = sld [smem:[#allocation5 + $0x82]]
        %s433 = sld [smem:[#allocation5 + $0x83]]
        %s434 = sld [smem:[#allocation5 + $0x100]]
        %s435 = sld [smem:[#allocation5 + $0x101]]
        %s436 = sld [smem:[#allocation5 + $0x102]]
        %s437 = sld [smem:[#allocation5 + $0x103]]
        %s438 = sld [smem:[#allocation5 + $0x180]]
        %s439 = sld [smem:[#allocation5 + $0x181]]
        %s440 = sld [smem:[#allocation5 + $0x182]]
        %s441 = sld [smem:[#allocation5 + $0x183]]
        %s442 = sld [smem:[#allocation5 + $0x200]]
        %s443 = sld [smem:[#allocation5 + $0x201]]
        %s444 = sld [smem:[#allocation5 + $0x202]]
        %s445 = sld [smem:[#allocation5 + $0x203]]
        %s446 = sld [smem:[#allocation5 + $0x280]]
        %s447 = sld [smem:[#allocation5 + $0x281]]
        %s448 = sld [smem:[#allocation5 + $0x282]]
        %s449 = sld [smem:[#allocation5 + $0x283]]
        %s450 = sld [smem:[#allocation5 + $0x300]]
        %s451 = sld [smem:[#allocation5 + $0x301]]
        %s452 = sld [smem:[#allocation5 + $0x302]]
        %s453 = sld [smem:[#allocation5 + $0x303]]
        %s454 = sld [smem:[#allocation5 + $0x380]]
        %s455 = sld [smem:[#allocation5 + $0x381]]
        %s456 = sld [smem:[#allocation5 + $0x382]]
        %s457 = sld [smem:[#allocation5 + $0x383]]
        %s458 = sld [smem:[#allocation7]]
        %s459 = sld [smem:[#allocation7 + $0x1]]
        %s460 = sld [smem:[#allocation7 + $0x2]]
        %s461 = sld [smem:[#allocation7 + $0x3]]
        %s462 = sld [smem:[#allocation7 + $0x4]]
        %s463 = sld [smem:[#allocation7 + $0x5]]
        %s464 = sld [smem:[#allocation7 + $0x6]]
        %s465 = sld [smem:[#allocation7 + $0x7]]
        %s466 = sld [smem:[#allocation8]]
        %s467 = sld [smem:[#allocation8 + $0x1]]
        %s468 = sld [smem:[#allocation8 + $0x2]]
        %s469 = sld [smem:[#allocation8 + $0x3]]
        %s470 = sld [smem:[#allocation8 + $0x4]]
        %s471 = sld [smem:[#allocation8 + $0x5]]
        %s472 = sld [smem:[#allocation8 + $0x6]]
        %s473 = sld [smem:[#allocation8 + $0x7]]
        %s474 = sld [smem:[#allocation2]]
        %v475 = vld [vmem:[%s377] sm:$0xff]
        %s476 = sadd.s32 0, 8
        %s477 = scalar_lea.vmem %s377, %s476
        %v478 = vld [vmem:[%s477] sm:$0xff]
        %s479 = sadd.s32 0, 16
        %s480 = scalar_lea.vmem %s377, %s479
        %v481 = vld [vmem:[%s480] sm:$0xff]
        %s482 = sadd.s32 0, 24
        %s483 = scalar_lea.vmem %s377, %s482
        %v484 = vld [vmem:[%s483] sm:$0xff]
        %v485 = vld [vmem:[%s385] sm:$0xff]
        %s486 = scalar_lea.vmem %s385, %s476
        %v487 = vld [vmem:[%s486] sm:$0xff]
        %s488 = scalar_lea.vmem %s385, %s479
        %v489 = vld [vmem:[%s488] sm:$0xff]
        %s490 = scalar_lea.vmem %s385, %s482
        %v491 = vld [vmem:[%s490] sm:$0xff]
        %v492 = vstv %s474
        %v493 = vstv %s394
        %v494 = vmul.f32 %v475, %v493
        %v495 = vstv %s466
        %v496 = vadd.f32 %v494, %v495
        %v497 = vstv %s395
        %v498 = vmul.f32 %v478, %v497
        %v499 = vadd.f32 %v496, %v498
        %v500 = vstv %s396
        %v501 = vmul.f32 %v481, %v500
        %v502 = vadd.f32 %v499, %v501
        %v503 = vstv %s397
        %v504 = vmul.f32 %v484, %v503
        %v505 = vadd.f32 %v502, %v504
        %v506 = vstv %s426
        %v507 = vmul.f32 %v485, %v506
        %v508 = vadd.f32 %v505, %v507
        %v509 = vstv %s427
        %v510 = vmul.f32 %v487, %v509
        %v511 = vadd.f32 %v508, %v510
        %v512 = vstv %s428
        %v513 = vmul.f32 %v489, %v512
        %v514 = vadd.f32 %v511, %v513
        %v515 = vstv %s429
        %v516 = vmul.f32 %v491, %v515
        %v517 = vadd.f32 %v514, %v516
        %v518 = vmax.f32 %v517, 0.0
        %v519 = vstv %s458
        %v520 = vmul.f32 %v518, %v519
        %v521 = vadd.f32 %v492, %v520
        %v522 = vstv %s398
        %v523 = vmul.f32 %v475, %v522
        %v524 = vstv %s467
        %v525 = vadd.f32 %v523, %v524
        %v526 = vstv %s399
        %v527 = vmul.f32 %v478, %v526
        %v528 = vadd.f32 %v525, %v527
        %v529 = vstv %s400
        %v530 = vmul.f32 %v481, %v529
        %v531 = vadd.f32 %v528, %v530
        %v532 = vstv %s401
        %v533 = vmul.f32 %v484, %v532
        %v534 = vadd.f32 %v531, %v533
        %v535 = vstv %s430
        %v536 = vmul.f32 %v485, %v535
        %v537 = vadd.f32 %v534, %v536
        %v538 = vstv %s431
        %v539 = vmul.f32 %v487, %v538
        %v540 = vadd.f32 %v537, %v539
        %v541 = vstv %s432
        %v542 = vmul.f32 %v489, %v541
        %v543 = vadd.f32 %v540, %v542
        %v544 = vstv %s433
        %v545 = vmul.f32 %v491, %v544
        %v546 = vadd.f32 %v543, %v545
        %v547 = vmax.f32 %v546, 0.0
        %v548 = vstv %s459
        %v549 = vmul.f32 %v547, %v548
        %v550 = vadd.f32 %v521, %v549
        %v551 = vstv %s402
        %v552 = vmul.f32 %v475, %v551
        %v553 = vstv %s468
        %v554 = vadd.f32 %v552, %v553
        %v555 = vstv %s403
        %v556 = vmul.f32 %v478, %v555
        %v557 = vadd.f32 %v554, %v556
        %v558 = vstv %s404
        %v559 = vmul.f32 %v481, %v558
        %v560 = vadd.f32 %v557, %v559
        %v561 = vstv %s405
        %v562 = vmul.f32 %v484, %v561
        %v563 = vadd.f32 %v560, %v562
        %v564 = vstv %s434
        %v565 = vmul.f32 %v485, %v564
        %v566 = vadd.f32 %v563, %v565
        %v567 = vstv %s435
        %v568 = vmul.f32 %v487, %v567
        %v569 = vadd.f32 %v566, %v568
        %v570 = vstv %s436
        %v571 = vmul.f32 %v489, %v570
        %v572 = vadd.f32 %v569, %v571
        %v573 = vstv %s437
        %v574 = vmul.f32 %v491, %v573
        %v575 = vadd.f32 %v572, %v574
        %v576 = vmax.f32 %v575, 0.0
        %v577 = vstv %s460
        %v578 = vmul.f32 %v576, %v577
        %v579 = vadd.f32 %v550, %v578
        %v580 = vstv %s406
        %v581 = vmul.f32 %v475, %v580
        %v582 = vstv %s469
        %v583 = vadd.f32 %v581, %v582
        %v584 = vstv %s407
        %v585 = vmul.f32 %v478, %v584
        %v586 = vadd.f32 %v583, %v585
        %v587 = vstv %s408
        %v588 = vmul.f32 %v481, %v587
        %v589 = vadd.f32 %v586, %v588
        %v590 = vstv %s409
        %v591 = vmul.f32 %v484, %v590
        %v592 = vadd.f32 %v589, %v591
        %v593 = vstv %s438
        %v594 = vmul.f32 %v485, %v593
        %v595 = vadd.f32 %v592, %v594
        %v596 = vstv %s439
        %v597 = vmul.f32 %v487, %v596
        %v598 = vadd.f32 %v595, %v597
        %v599 = vstv %s440
        %v600 = vmul.f32 %v489, %v599
        %v601 = vadd.f32 %v598, %v600
        %v602 = vstv %s441
        %v603 = vmul.f32 %v491, %v602
        %v604 = vadd.f32 %v601, %v603
        %v605 = vmax.f32 %v604, 0.0
        %v606 = vstv %s461
        %v607 = vmul.f32 %v605, %v606
        %v608 = vadd.f32 %v579, %v607
        %v609 = vstv %s410
        %v610 = vmul.f32 %v475, %v609
        %v611 = vstv %s470
        %v612 = vadd.f32 %v610, %v611
        %v613 = vstv %s411
        %v614 = vmul.f32 %v478, %v613
        %v615 = vadd.f32 %v612, %v614
        %v616 = vstv %s412
        %v617 = vmul.f32 %v481, %v616
        %v618 = vadd.f32 %v615, %v617
        %v619 = vstv %s413
        %v620 = vmul.f32 %v484, %v619
        %v621 = vadd.f32 %v618, %v620
        %v622 = vstv %s442
        %v623 = vmul.f32 %v485, %v622
        %v624 = vadd.f32 %v621, %v623
        %v625 = vstv %s443
        %v626 = vmul.f32 %v487, %v625
        %v627 = vadd.f32 %v624, %v626
        %v628 = vstv %s444
        %v629 = vmul.f32 %v489, %v628
        %v630 = vadd.f32 %v627, %v629
        %v631 = vstv %s445
        %v632 = vmul.f32 %v491, %v631
        %v633 = vadd.f32 %v630, %v632
        %v634 = vmax.f32 %v633, 0.0
        %v635 = vstv %s462
        %v636 = vmul.f32 %v634, %v635
        %v637 = vadd.f32 %v608, %v636
        %v638 = vstv %s414
        %v639 = vmul.f32 %v475, %v638
        %v640 = vstv %s471
        %v641 = vadd.f32 %v639, %v640
        %v642 = vstv %s415
        %v643 = vmul.f32 %v478, %v642
        %v644 = vadd.f32 %v641, %v643
        %v645 = vstv %s416
        %v646 = vmul.f32 %v481, %v645
        %v647 = vadd.f32 %v644, %v646
        %v648 = vstv %s417
        %v649 = vmul.f32 %v484, %v648
        %v650 = vadd.f32 %v647, %v649
        %v651 = vstv %s446
        %v652 = vmul.f32 %v485, %v651
        %v653 = vadd.f32 %v650, %v652
        %v654 = vstv %s447
        %v655 = vmul.f32 %v487, %v654
        %v656 = vadd.f32 %v653, %v655
        %v657 = vstv %s448
        %v658 = vmul.f32 %v489, %v657
        %v659 = vadd.f32 %v656, %v658
        %v660 = vstv %s449
        %v661 = vmul.f32 %v491, %v660
        %v662 = vadd.f32 %v659, %v661
        %v663 = vmax.f32 %v662, 0.0
        %v664 = vstv %s463
        %v665 = vmul.f32 %v663, %v664
        %v666 = vadd.f32 %v637, %v665
        %v667 = vstv %s418
        %v668 = vmul.f32 %v475, %v667
        %v669 = vstv %s472
        %v670 = vadd.f32 %v668, %v669
        %v671 = vstv %s419
        %v672 = vmul.f32 %v478, %v671
        %v673 = vadd.f32 %v670, %v672
        %v674 = vstv %s420
        %v675 = vmul.f32 %v481, %v674
        %v676 = vadd.f32 %v673, %v675
        %v677 = vstv %s421
        %v678 = vmul.f32 %v484, %v677
        %v679 = vadd.f32 %v676, %v678
        %v680 = vstv %s450
        %v681 = vmul.f32 %v485, %v680
        %v682 = vadd.f32 %v679, %v681
        %v683 = vstv %s451
        %v684 = vmul.f32 %v487, %v683
        %v685 = vadd.f32 %v682, %v684
        %v686 = vstv %s452
        %v687 = vmul.f32 %v489, %v686
        %v688 = vadd.f32 %v685, %v687
        %v689 = vstv %s453
        %v690 = vmul.f32 %v491, %v689
        %v691 = vadd.f32 %v688, %v690
        %v692 = vmax.f32 %v691, 0.0
        %v693 = vstv %s464
        %v694 = vmul.f32 %v692, %v693
        %v695 = vadd.f32 %v666, %v694
        %v696 = vstv %s422
        %v697 = vmul.f32 %v475, %v696
        %v698 = vstv %s473
        %v699 = vadd.f32 %v697, %v698
        %v700 = vstv %s423
        %v701 = vmul.f32 %v478, %v700
        %v702 = vadd.f32 %v699, %v701
        %v703 = vstv %s424
        %v704 = vmul.f32 %v481, %v703
        %v705 = vadd.f32 %v702, %v704
        %v706 = vstv %s425
        %v707 = vmul.f32 %v484, %v706
        %v708 = vadd.f32 %v705, %v707
        %v709 = vstv %s454
        %v710 = vmul.f32 %v485, %v709
        %v711 = vadd.f32 %v708, %v710
        %v712 = vstv %s455
        %v713 = vmul.f32 %v487, %v712
        %v714 = vadd.f32 %v711, %v713
        %v715 = vstv %s456
        %v716 = vmul.f32 %v489, %v715
        %v717 = vadd.f32 %v714, %v716
        %v718 = vstv %s457
        %v719 = vmul.f32 %v491, %v718
        %v720 = vadd.f32 %v717, %v719
        %v721 = vmax.f32 %v720, 0.0
        %v722 = vstv %s465
        %v723 = vmul.f32 %v721, %v722
        %v724 = vadd.f32 %v695, %v723
        %v725 = vxor.u32 %v724, 2147483648
        %v726 = vmul.f32 %v725, 1.442695
        %v727 = vpow.pop %v726
        %v728 = vadd.f32 %v727, 1.0
        %v729 = vrcp.pop %v728
        %v730 = vmul.f32 %v728, %v729
        %v731 = vsub.f32 1.0, %v730
        %v732 = vmul.f32 %v729, %v731
        %v733 = vadd.f32 %v729, %v732
        %vm734 = vweird.f32 %v728
        %vm735 = vweird.f32 %v729
        %vm736 = vmor %vm734, %vm735
        %v737 = vsel %vm736, %v729, %v733
        %v738 = vand.u32 2147483647, %v728
        %vm739 = vcmp.eq.f32.partialorder %v738, 8.507059e+37
        %v740 = vand.u32 %v728, 2147483648
        %v741 = vor.u32 1.1754944e-38, %v740
        %v742 = vsel %vm739, %v741, %v737
        %v743 = vmul.f32 1.0, %v742
        %v744 = vmul.f32 %v485, %v743
        %745 = vst [vmem:[%s393] sm:$0xff] %v744
        %v746 = vmul.f32 %v487, %v743
        %s747 = scalar_lea.vmem %s393, %s476
        %748 = vst [vmem:[%s747] sm:$0xff] %v746
        %v749 = vmul.f32 %v489, %v743
        %s750 = scalar_lea.vmem %s393, %s479
        %751 = vst [vmem:[%s750] sm:$0xff] %v749
        %v752 = vmul.f32 %v491, %v743
        %s753 = scalar_lea.vmem %s393, %s482
        %754 = vst [vmem:[%s753] sm:$0xff] %v752
        %p755 = scmp.lt.s32.totalorder %s26, 1
        %s756 = scalar_select %p755, %s26, 1
        %p757 = scmp.lt.s32.totalorder %s27, 0
        %s758 = scalar_select %p757, %s27, 0
        %s759 = smul.addr %s756, 4
        %s760 = sadd.s32 %s758, %s759
        %s761 = smul.addr %s760, 8
        %s762 = scalar_lea.vmem %s7, %s761
        // Predicated region
        $region65: #{attention_gate.1} parent=47 // pred_check
          %p763 = pneg %p215
        $region66: #{attention_gate.1} parent=47 // pred_check_branch
          %765 = sbr.rel (%p763) target = $region68
        $region67: #{attention_gate.1} parent=47 // pred_region
          _
        $region68: #{attention_gate.1} parent=47 // pred_fallthru
          _
      $region48: #{attention_gate.1} parent=5 // pred_fallthru
        _
      %p766 = scmp.le.s32.totalorder 2, %s17
      // Predicated region
      $region69: #{attention_gate.1} parent=5 // pred_check
        %p767 = pneg %p766
      $region70: #{attention_gate.1} parent=5 // pred_check_branch
        %769 = sbr.rel (%p767) target = $region72
      $region71: #{attention_gate.1} parent=5 // pred_region
        %s770 = ssub.s32 %s17, 2
        // Predicated region
        $region73: #{attention_gate.1} parent=71 // pred_check
          %p771 = pneg %p221
        $region74: #{attention_gate.1} parent=71 // pred_check_branch
          %773 = sbr.rel (%p771) target = $region76
        $region75: #{attention_gate.1} parent=71 // pred_region
          %p774 = scmp.lt.s32.totalorder %s28, 1
          %s775 = scalar_select %p774, %s28, 1
          %p776 = scmp.lt.s32.totalorder %s29, 0
          %s777 = scalar_select %p776, %s29, 0
          %s778 = smul.addr %s775, 4
          %s779 = sadd.s32 %s777, %s778
          %s780 = smul.addr %s779, 8
          %s781 = scalar_lea.vmem %s7, %s780
        $region76: #{attention_gate.1} parent=71 // pred_fallthru
          _
      $region72: #{attention_gate.1} parent=5 // pred_fallthru
        _
    $region6: #{attention_gate.1} parent=1 // loop_footer
      %s21 = sadd.s32 1, %s17
    $region7: #{attention_gate.1} parent=1 // loop_footer_branch
      %16 = sbr.rel target = $region3
    $region8: #{attention_gate.1} parent=1 // loop_exit
      _
    %782 = vsyncpa [#allocation4], 1
    %s783 = scalar_lea.sflag [#allocation4], 1
    %784 = vsyncpa %s783, 1
    %785 = vsyncpa [#allocation6], 1
    %786 = vsyncpa [#allocation9], 1

</llo_original>
